<compile_context>
chip_gen: v7x
topology: tpu7x:2x2x1
jax: 0.10.0
libtpu: 0.0.40
codegen_flags: <defaults>
</compile_context>

<pallas_src>
import jax
import jax.numpy as jnp
from jax import lax
from jax.experimental import pallas as pl
from jax.experimental.pallas import tpu as pltpu


def _softplus(z):
    # torch.nn.Softplus(beta=1, threshold=20): identity above the threshold,
    # log1p(exp(z)) below it. For z > 20 exp may saturate to inf, but
    # log1p(inf) = inf (never NaN) and the select picks z; for z <= 20 exp
    # cannot overflow. Runs on the EUP in f32.
    return jnp.where(z > 20.0, z, jnp.log1p(jnp.exp(z)))


def _mlp_kernel(x_ref, w1_ref, b1_ref, w2_ref, b2_ref, w3_ref, b3_ref,
                w4_ref, b4_ref, o_ref):
    """Fused 4-layer MLP on one batch tile.

    Input block is batch-major (batch_tile, x_in); hidden activations are
    feature-major (features, batch_tile) so the batch tile sits on the lane
    axis; the final result is transposed in-kernel and stored batch-major.
    Weights are torch-layout (out, in); biases are (out, 1) columns that
    broadcast over the lane (batch) dimension.
    """
    cdt = w1_ref.dtype  # MXU compute dtype (float32 or bfloat16)
    xb = x_ref[...].astype(cdt)                      # (tile, x_in), batch-major

    # Layer 1: fold the layout change into the matmul by contracting both
    # operands on their feature axis (rhs-transposed dot): (H, x_in)x(tile, x_in)
    # -> (H, tile) feature-major, f32 accumulation on the MXU.
    h = lax.dot_general(w1_ref[...], xb,
                        dimension_numbers=(((1,), (1,)), ((), ())),
                        preferred_element_type=jnp.float32)
    h = _softplus(h + b1_ref[...])                   # bias (H,1) broadcasts over lanes

    def mid_layer(w_ref, b_ref, a):
        y = jnp.dot(w_ref[...], a.astype(cdt), preferred_element_type=jnp.float32)
        return _softplus(y + b_ref[...])

    h = mid_layer(w2_ref, b2_ref, h)                 # (H, tile)
    h = mid_layer(w3_ref, b3_ref, h)                 # (H, tile)

    y = jnp.dot(w4_ref[...], h.astype(cdt), preferred_element_type=jnp.float32)
    y = y + b4_ref[...]                              # (x_out, tile), f32

    # In-kernel XLU transpose -> batch-major (tile, x_out) block, so the
    # wrapper needs no output transpose pass over HBM.
    o_ref[...] = jnp.transpose(y, (1, 0)).astype(o_ref.dtype)


def _pick_batch_tile(n):
    """Largest tile in {1024, 512, 256, 128} that keeps the grid >= 2 steps
    (so both v7x TensorCores get work); 128 for tiny batches."""
    for t in (1024, 512, 256, 128):
        if pl.cdiv(n, t) >= 2:
            return t
    return 128


def model_latent_f(x, params, *, batch_tile=None, compute_dtype=jnp.float32,
                   out_dtype=None):
    """Run the fused MLP Pallas kernel.

    x: (N, x_in) array (any N; the ragged last block is masked by Pallas).
    params: torch-layout weights w1..w4 of shape (out, in), biases b1..b4 of
            shape (out, 1), all float32.
    batch_tile: rows per grid step (multiple of 128); auto-picked if None.
    compute_dtype: jnp.float32 (default) or jnp.bfloat16 (recommended on
            v6e/v7x); accumulation is always f32.
    out_dtype: output dtype; defaults to compute_dtype (bf16 output halves the
            dominant writeback traffic on the bf16 path).
    """
    n, x_in = x.shape
    if batch_tile is None:
        batch_tile = _pick_batch_tile(n)
    assert batch_tile % 128 == 0, "batch_tile must be a multiple of 128"
    if out_dtype is None:
        out_dtype = compute_dtype

    w1, b1 = params["w1"], params["b1"]
    w2, b2 = params["w2"], params["b2"]
    w3, b3 = params["w3"], params["b3"]
    w4, b4 = params["w4"], params["b4"]
    x_out_dim = w4.shape[0]

    cd = compute_dtype
    # Weights are tiny: cast once on the host. x is NOT touched on the host
    # (no pad, no transpose, no cast) -- it is cast in-register inside the kernel.
    w1c, w2c, w3c, w4c = (w.astype(cd) for w in (w1, w2, w3, w4))

    # Weights/biases: constant block index -> resident in VMEM across the grid.
    rep = lambda a: pl.BlockSpec(a.shape, lambda i: (0, 0))

    grid_spec = pltpu.PrefetchScalarGridSpec(
        num_scalar_prefetch=0,
        grid=(pl.cdiv(n, batch_tile),),
        in_specs=[
            pl.BlockSpec((batch_tile, x_in), lambda i: (i, 0)),   # batch-major x
            rep(w1c), rep(b1),
            rep(w2c), rep(b2),
            rep(w3c), rep(b3),
            rep(w4c), rep(b4),
        ],
        out_specs=pl.BlockSpec((batch_tile, x_out_dim), lambda i: (i, 0)),
    )

    out = pl.pallas_call(
        _mlp_kernel,
        out_shape=jax.ShapeDtypeStruct((n, x_out_dim), out_dtype),
        grid_spec=grid_spec,
        compiler_params=pltpu.CompilerParams(
            dimension_semantics=("parallel",)),
    )(x, w1c, b1, w2c, b2, w3c, b3, w4c, b4)

    return out                                       # already (N, x_out)


def init_params(key, x_in, h_dim, x_out):
    """torch.nn.Linear-style init, torch layout: W (out, in), b (out, 1)."""
    dims = [(x_in, h_dim), (h_dim, h_dim), (h_dim, h_dim), (h_dim, x_out)]
    params = {}
    for idx, (fan_in, fan_out) in enumerate(dims, start=1):
        key, kw, kb = jax.random.split(key, 3)
        bound = 1.0 / jnp.sqrt(jnp.float32(fan_in))
        params[f"w{idx}"] = jax.random.uniform(
            kw, (fan_out, fan_in), jnp.float32, minval=-bound, maxval=bound)
        params[f"b{idx}"] = jax.random.uniform(
            kb, (fan_out, 1), jnp.float32, minval=-bound, maxval=bound)
    return params


def _reference(x, params):
    """Pure-JAX reference (batch-major, torch-layout weights, high precision)."""
    hi = lax.Precision.HIGHEST
    h = jax.nn.softplus(jnp.dot(x, params["w1"].T, precision=hi) + params["b1"][:, 0])
    h = jax.nn.softplus(jnp.dot(h, params["w2"].T, precision=hi) + params["b2"][:, 0])
    h = jax.nn.softplus(jnp.dot(h, params["w3"].T, precision=hi) + params["b3"][:, 0])
    return jnp.dot(h, params["w4"].T, precision=hi) + params["b4"][:, 0]


if __name__ == "__main__":
    # Shapes implied by the module: x_in = d, H = 3*d, x_out = 3*d.
    d = 16
    x_in, h_dim, x_out = d, 3 * d, 3 * d
    batch = 300  # NOT a multiple of the tile: exercises the ragged last block

    key = jax.random.PRNGKey(0)
    key, kp, kx = jax.random.split(key, 3)
    params = init_params(kp, x_in, h_dim, x_out)
    x = jax.random.normal(kx, (batch, x_in), jnp.float32)

    ref = _reference(x, params)

    # f32 path (default; v5e-friendly). Auto tile -> 256 here (grid of 2).
    out = jax.block_until_ready(model_latent_f(x, params))
    assert out.shape == (batch, x_out)
    assert out.dtype == jnp.float32
    assert jnp.allclose(out, ref, atol=2e-4, rtol=2e-4), "f32 mismatch vs reference"

    # bf16 MXU path (recommended on v6e/v7x): bf16 inputs/weights/output,
    # f32 accumulation; lower precision, same semantics.
    out_bf16 = jax.block_until_ready(
        model_latent_f(x, params, compute_dtype=jnp.bfloat16))
    assert out_bf16.shape == (batch, x_out)
    err = float(jnp.max(jnp.abs(out_bf16.astype(jnp.float32) - ref)))
    assert err < 0.25, f"bf16 mismatch vs reference: {err}"

    print("KERNEL_OK")
</pallas_src>

<mosaic_0001>
module attributes {stable_mosaic.version = 11 : i64} {
  func.func @_mlp_kernel(%arg0: i32, %arg1: memref<256x16xf32, #tpu.memory_space<vmem>>, %arg2: memref<48x16xf32, #tpu.memory_space<vmem>>, %arg3: memref<48x1xf32, #tpu.memory_space<vmem>>, %arg4: memref<48x48xf32, #tpu.memory_space<vmem>>, %arg5: memref<48x1xf32, #tpu.memory_space<vmem>>, %arg6: memref<48x48xf32, #tpu.memory_space<vmem>>, %arg7: memref<48x1xf32, #tpu.memory_space<vmem>>, %arg8: memref<48x48xf32, #tpu.memory_space<vmem>>, %arg9: memref<48x1xf32, #tpu.memory_space<vmem>>, %arg10: memref<256x48xf32, #tpu.memory_space<vmem>>) attributes {dimension_semantics = [#tpu.dimension_semantics<parallel>], iteration_bounds = array<i64: 2>, scalar_prefetch = 0 : i64, scratch_operands = 0 : i64, tpu.core_type = #tpu.core_type<tc>, window_params = [{transform_indices = @transform_0, window_bounds = array<i64: 256, 16>}, {pipeline_mode = #tpu.pipeline_mode<synchronous>, transform_indices = @transform_1, window_bounds = array<i64: 48, 16>}, {pipeline_mode = #tpu.pipeline_mode<synchronous>, transform_indices = @transform_2, window_bounds = array<i64: 48, 1>}, {pipeline_mode = #tpu.pipeline_mode<synchronous>, transform_indices = @transform_3, window_bounds = array<i64: 48, 48>}, {pipeline_mode = #tpu.pipeline_mode<synchronous>, transform_indices = @transform_4, window_bounds = array<i64: 48, 1>}, {pipeline_mode = #tpu.pipeline_mode<synchronous>, transform_indices = @transform_5, window_bounds = array<i64: 48, 48>}, {pipeline_mode = #tpu.pipeline_mode<synchronous>, transform_indices = @transform_6, window_bounds = array<i64: 48, 1>}, {pipeline_mode = #tpu.pipeline_mode<synchronous>, transform_indices = @transform_7, window_bounds = array<i64: 48, 48>}, {pipeline_mode = #tpu.pipeline_mode<synchronous>, transform_indices = @transform_8, window_bounds = array<i64: 48, 1>}, {transform_indices = @transform_9, window_bounds = array<i64: 256, 48>}]} {
    %c0 = arith.constant 0 : index
    %c0_0 = arith.constant 0 : index
    %0 = vector.load %arg1[%c0, %c0_0] : memref<256x16xf32, #tpu.memory_space<vmem>>, vector<256x16xf32>
    %c0_1 = arith.constant 0 : index
    %c0_2 = arith.constant 0 : index
    %1 = vector.load %arg2[%c0_1, %c0_2] : memref<48x16xf32, #tpu.memory_space<vmem>>, vector<48x16xf32>
    %cst = arith.constant dense<0.000000e+00> : vector<48x256xf32>
    %2 = tpu.matmul %1, %0, %cst {dimension_numbers = #tpu.dot_dimension_numbers<[1], [1], [0], [0], [0, 0, 1, 0], [], []>} : vector<48x16xf32>, vector<256x16xf32>, vector<48x256xf32> -> vector<48x256xf32>
    %c0_3 = arith.constant 0 : index
    %c0_4 = arith.constant 0 : index
    %3 = vector.load %arg3[%c0_3, %c0_4] : memref<48x1xf32, #tpu.memory_space<vmem>>, vector<48x1xf32>
    %4 = vector.broadcast %3 : vector<48x1xf32> to vector<48x256xf32>
    %5 = arith.addf %2, %4 : vector<48x256xf32>
    %cst_5 = arith.constant 2.000000e+01 : f32
    %6 = vector.broadcast %cst_5 : f32 to vector<48x256xf32>
    %7 = arith.cmpf ogt, %5, %6 : vector<48x256xf32>
    %8 = math.exp %5 : vector<48x256xf32>
    %9 = math.log1p %8 : vector<48x256xf32>
    %10 = arith.select %7, %5, %9 : vector<48x256xi1>, vector<48x256xf32>
    %c0_6 = arith.constant 0 : index
    %c0_7 = arith.constant 0 : index
    %11 = vector.load %arg4[%c0_6, %c0_7] : memref<48x48xf32, #tpu.memory_space<vmem>>, vector<48x48xf32>
    %cst_8 = arith.constant dense<0.000000e+00> : vector<48x256xf32>
    %12 = tpu.matmul %11, %10, %cst_8 {dimension_numbers = #tpu.dot_dimension_numbers<[1], [0], [0], [1], [0, 0, 1, 1], [], []>} : vector<48x48xf32>, vector<48x256xf32>, vector<48x256xf32> -> vector<48x256xf32>
    %c0_9 = arith.constant 0 : index
    %c0_10 = arith.constant 0 : index
    %13 = vector.load %arg5[%c0_9, %c0_10] : memref<48x1xf32, #tpu.memory_space<vmem>>, vector<48x1xf32>
    %14 = vector.broadcast %13 : vector<48x1xf32> to vector<48x256xf32>
    %15 = arith.addf %12, %14 : vector<48x256xf32>
    %cst_11 = arith.constant 2.000000e+01 : f32
    %16 = vector.broadcast %cst_11 : f32 to vector<48x256xf32>
    %17 = arith.cmpf ogt, %15, %16 : vector<48x256xf32>
    %18 = math.exp %15 : vector<48x256xf32>
    %19 = math.log1p %18 : vector<48x256xf32>
    %20 = arith.select %17, %15, %19 : vector<48x256xi1>, vector<48x256xf32>
    %c0_12 = arith.constant 0 : index
    %c0_13 = arith.constant 0 : index
    %21 = vector.load %arg6[%c0_12, %c0_13] : memref<48x48xf32, #tpu.memory_space<vmem>>, vector<48x48xf32>
    %cst_14 = arith.constant dense<0.000000e+00> : vector<48x256xf32>
    %22 = tpu.matmul %21, %20, %cst_14 {dimension_numbers = #tpu.dot_dimension_numbers<[1], [0], [0], [1], [0, 0, 1, 1], [], []>} : vector<48x48xf32>, vector<48x256xf32>, vector<48x256xf32> -> vector<48x256xf32>
    %c0_15 = arith.constant 0 : index
    %c0_16 = arith.constant 0 : index
    %23 = vector.load %arg7[%c0_15, %c0_16] : memref<48x1xf32, #tpu.memory_space<vmem>>, vector<48x1xf32>
    %24 = vector.broadcast %23 : vector<48x1xf32> to vector<48x256xf32>
    %25 = arith.addf %22, %24 : vector<48x256xf32>
    %cst_17 = arith.constant 2.000000e+01 : f32
    %26 = vector.broadcast %cst_17 : f32 to vector<48x256xf32>
    %27 = arith.cmpf ogt, %25, %26 : vector<48x256xf32>
    %28 = math.exp %25 : vector<48x256xf32>
    %29 = math.log1p %28 : vector<48x256xf32>
    %30 = arith.select %27, %25, %29 : vector<48x256xi1>, vector<48x256xf32>
    %c0_18 = arith.constant 0 : index
    %c0_19 = arith.constant 0 : index
    %31 = vector.load %arg8[%c0_18, %c0_19] : memref<48x48xf32, #tpu.memory_space<vmem>>, vector<48x48xf32>
    %cst_20 = arith.constant dense<0.000000e+00> : vector<48x256xf32>
    %32 = tpu.matmul %31, %30, %cst_20 {dimension_numbers = #tpu.dot_dimension_numbers<[1], [0], [0], [1], [0, 0, 1, 1], [], []>} : vector<48x48xf32>, vector<48x256xf32>, vector<48x256xf32> -> vector<48x256xf32>
    %c0_21 = arith.constant 0 : index
    %c0_22 = arith.constant 0 : index
    %33 = vector.load %arg9[%c0_21, %c0_22] : memref<48x1xf32, #tpu.memory_space<vmem>>, vector<48x1xf32>
    %34 = vector.broadcast %33 : vector<48x1xf32> to vector<48x256xf32>
    %35 = arith.addf %32, %34 : vector<48x256xf32>
    %36 = tpu.transpose %35, [1, 0] : vector<48x256xf32> -> vector<256x48xf32>
    %c0_23 = arith.constant 0 : index
    %c0_24 = arith.constant 0 : index
    %37 = vector.load %arg10[%c0_23, %c0_24] : memref<256x48xf32, #tpu.memory_space<vmem>>, vector<256x48xf32>
    tpu.vector_store %arg10[%c0_23, %c0_24], %36 {strides = array<i32>} : memref<256x48xf32, #tpu.memory_space<vmem>>, vector<256x48xf32>,
    return
  }
  func.func @transform_0(%arg0: i32) -> (i32, i32) {
    %c0_i32 = arith.constant 0 : i32
    %c0_i32_0 = arith.constant 0 : i32
    return %arg0, %c0_i32 : i32, i32
  }
  func.func @transform_1(%arg0: i32) -> (i32, i32) {
    %c0_i32 = arith.constant 0 : i32
    %c0_i32_0 = arith.constant 0 : i32
    %c0_i32_1 = arith.constant 0 : i32
    return %c0_i32, %c0_i32_0 : i32, i32
  }
  func.func @transform_2(%arg0: i32) -> (i32, i32) {
    %c0_i32 = arith.constant 0 : i32
    %c0_i32_0 = arith.constant 0 : i32
    %c0_i32_1 = arith.constant 0 : i32
    return %c0_i32, %c0_i32_0 : i32, i32
  }
  func.func @transform_3(%arg0: i32) -> (i32, i32) {
    %c0_i32 = arith.constant 0 : i32
    %c0_i32_0 = arith.constant 0 : i32
    %c0_i32_1 = arith.constant 0 : i32
    return %c0_i32, %c0_i32_0 : i32, i32
  }
  func.func @transform_4(%arg0: i32) -> (i32, i32) {
    %c0_i32 = arith.constant 0 : i32
    %c0_i32_0 = arith.constant 0 : i32
    %c0_i32_1 = arith.constant 0 : i32
    return %c0_i32, %c0_i32_0 : i32, i32
  }
  func.func @transform_5(%arg0: i32) -> (i32, i32) {
    %c0_i32 = arith.constant 0 : i32
    %c0_i32_0 = arith.constant 0 : i32
    %c0_i32_1 = arith.constant 0 : i32
    return %c0_i32, %c0_i32_0 : i32, i32
  }
  func.func @transform_6(%arg0: i32) -> (i32, i32) {
    %c0_i32 = arith.constant 0 : i32
    %c0_i32_0 = arith.constant 0 : i32
    %c0_i32_1 = arith.constant 0 : i32
    return %c0_i32, %c0_i32_0 : i32, i32
  }
  func.func @transform_7(%arg0: i32) -> (i32, i32) {
    %c0_i32 = arith.constant 0 : i32
    %c0_i32_0 = arith.constant 0 : i32
    %c0_i32_1 = arith.constant 0 : i32
    return %c0_i32, %c0_i32_0 : i32, i32
  }
  func.func @transform_8(%arg0: i32) -> (i32, i32) {
    %c0_i32 = arith.constant 0 : i32
    %c0_i32_0 = arith.constant 0 : i32
    %c0_i32_1 = arith.constant 0 : i32
    return %c0_i32, %c0_i32_0 : i32, i32
  }
  func.func @transform_9(%arg0: i32) -> (i32, i32) {
    %c0_i32 = arith.constant 0 : i32
    %c0_i32_0 = arith.constant 0 : i32
    return %arg0, %c0_i32 : i32, i32
  }
}

</mosaic_0001>

<llo_original>
// kernel: tpu_custom_call.1
$region0: #{tpu_custom_call.1}
  #allocation0 [shape = 'u32[]', space=smem, size = 0x4, offset = 0x4, fixed_abs, tag = 'smem constant byte address 0x4 - core index']
  #allocation1 [shape = 'u32[144,128]{1,0:T(1,128)}', space=vmem, size = 0x12000, scoped, tag = 'internal scratch']
  %s0 = inlined_call_operand.vmem [shape: f32[300,16], index: 0, kind: input, shape index: {}]
  %s1 = inlined_call_operand.vmem [shape: f32[48,16], index: 1, kind: input, shape index: {}]
  %s2 = inlined_call_operand.vmem [shape: f32[48,1], index: 2, kind: input, shape index: {}]
  %s3 = inlined_call_operand.vmem [shape: f32[48,48], index: 3, kind: input, shape index: {}]
  %s4 = inlined_call_operand.vmem [shape: f32[48,1], index: 4, kind: input, shape index: {}]
  %s5 = inlined_call_operand.vmem [shape: f32[48,48], index: 5, kind: input, shape index: {}]
  %s6 = inlined_call_operand.vmem [shape: f32[48,1], index: 6, kind: input, shape index: {}]
  %s7 = inlined_call_operand.vmem [shape: f32[48,48], index: 7, kind: input, shape index: {}]
  %s8 = inlined_call_operand.vmem [shape: f32[48,1], index: 8, kind: input, shape index: {}]
  %s9 = inlined_call_operand.vmem [shape: f32[300,48], index: 9, kind: output, shape index: {}]
  %s10 = sld [smem:[#allocation0]]
  $region117: #{tpu_custom_call.1} parent=0
    _
  %s12 = ssub.s32 1, %s10
  %s13 = scalar_select 0, %s12, %s10
  $region1: #{tpu_custom_call.1} parent=0
    #allocation2 [shape = 'u8[262144]{0}', space=vmem, size = 0x40000, scoped, tag = 'output window, operand 0']
    loop: start=0, step=1, limit=4
    $region2: #{tpu_custom_call.1} parent=1 // loop_pre_header
      _
    $region3: #{tpu_custom_call.1} parent=1 // loop_header
      %s15 = sphi 0, %s19
      %p16 = scmp.ge.s32.totalorder %s15, 4
      %s25 = sphi 0, %s27
      %s28 = sphi 0, %s25
      %s29 = sphi 0, %s28
      %s45 = sphi 0, %s29
      %s49 = sphi 0, %s49
      %s51 = sphi 0, %s49
      %s52 = sphi 0, %s51
      %s66 = sphi 0, %s52
      %s70 = sphi 0, %s70
      %s72 = sphi 0, %s70
      %s73 = sphi 0, %s72
      %s87 = sphi 0, %s73
      %s91 = sphi 0, %s91
      %s93 = sphi 0, %s91
      %s94 = sphi 0, %s93
      %s108 = sphi 0, %s94
      %s112 = sphi 0, %s112
      %s114 = sphi 0, %s112
      %s115 = sphi 0, %s114
      %s129 = sphi 0, %s115
      %s133 = sphi 0, %s133
      %s135 = sphi 0, %s133
      %s136 = sphi 0, %s135
      %s150 = sphi 0, %s136
      %s154 = sphi 0, %s154
      %s156 = sphi 0, %s154
      %s157 = sphi 0, %s156
      %s171 = sphi 0, %s157
      %s175 = sphi 0, %s175
      %s177 = sphi 0, %s175
      %s178 = sphi 0, %s177
      %s192 = sphi 0, %s178
      %s196 = sphi 0, %s196
      %s198 = sphi 0, %s196
      %s199 = sphi 0, %s198
      %s213 = sphi 0, %s199
      %s219 = sphi 0, %s221
      %s222 = sphi 0, %s219
      %s223 = sphi 0, %s222
      %s239 = sphi 0, %s223
    $region4: #{tpu_custom_call.1} parent=1 // loop_header_branch
      %18 = sbr.rel (%p16) target = $region8
    $region5: #{tpu_custom_call.1} parent=1 // loop_body
      %s20 = ssub.s32 %s15, 1
      %s21 = ssub.s32 %s15, 2
      %s22 = sadd.s32 %s15, 1
      %s23 = ssub.s32 %s15, %s22
      %p24 = scmp.eq.s32.totalorder %s23, 0
      %s26 = sadd.s32 %s25, 1
      %s27 = scalar_select %p24, %s25, %s26
      %p30 = pneg %p24
      %p31 = scmp.eq.s32.totalorder %s15, 1
      %p32 = por %p30, %p31
      %p33 = scmp.ne.s32.totalorder %s25, %s28
      %p34 = scmp.eq.s32.totalorder %s15, 0
      %p35 = por %p33, %p34
      %p36 = scmp.ne.s32.totalorder %s25, %s28
      %p37 = scmp.eq.s32.totalorder %s20, 1
      %p38 = por %p36, %p37
      %p39 = scmp.ne.s32.totalorder %s28, %s29
      %p40 = scmp.eq.s32.totalorder %s20, 0
      %p41 = por %p39, %p40
      %p42 = scmp.ne.s32.totalorder %s28, %s29
      %p43 = scmp.eq.s32.totalorder %s21, 1
      %p44 = por %p42, %p43
      %p46 = scmp.ne.s32.totalorder %s29, %s45
      %p47 = scmp.eq.s32.totalorder %s21, 0
      %p48 = por %p46, %p47
      %s50 = sadd.s32 %s49, 1
      %p53 = scmp.eq.s32.totalorder %s15, 1
      %p54 = scmp.ne.s32.totalorder %s49, %s51
      %p55 = scmp.eq.s32.totalorder %s15, 0
      %p56 = por %p54, %p55
      %p57 = scmp.ne.s32.totalorder %s49, %s51
      %p58 = scmp.eq.s32.totalorder %s20, 1
      %p59 = por %p57, %p58
      %p60 = scmp.ne.s32.totalorder %s51, %s52
      %p61 = scmp.eq.s32.totalorder %s20, 0
      %p62 = por %p60, %p61
      %p63 = scmp.ne.s32.totalorder %s51, %s52
      %p64 = scmp.eq.s32.totalorder %s21, 1
      %p65 = por %p63, %p64
      %p67 = scmp.ne.s32.totalorder %s52, %s66
      %p68 = scmp.eq.s32.totalorder %s21, 0
      %p69 = por %p67, %p68
      %s71 = sadd.s32 %s70, 1
      %p74 = scmp.eq.s32.totalorder %s15, 1
      %p75 = scmp.ne.s32.totalorder %s70, %s72
      %p76 = scmp.eq.s32.totalorder %s15, 0
      %p77 = por %p75, %p76
      %p78 = scmp.ne.s32.totalorder %s70, %s72
      %p79 = scmp.eq.s32.totalorder %s20, 1
      %p80 = por %p78, %p79
      %p81 = scmp.ne.s32.totalorder %s72, %s73
      %p82 = scmp.eq.s32.totalorder %s20, 0
      %p83 = por %p81, %p82
      %p84 = scmp.ne.s32.totalorder %s72, %s73
      %p85 = scmp.eq.s32.totalorder %s21, 1
      %p86 = por %p84, %p85
      %p88 = scmp.ne.s32.totalorder %s73, %s87
      %p89 = scmp.eq.s32.totalorder %s21, 0
      %p90 = por %p88, %p89
      %s92 = sadd.s32 %s91, 1
      %p95 = scmp.eq.s32.totalorder %s15, 1
      %p96 = scmp.ne.s32.totalorder %s91, %s93
      %p97 = scmp.eq.s32.totalorder %s15, 0
      %p98 = por %p96, %p97
      %p99 = scmp.ne.s32.totalorder %s91, %s93
      %p100 = scmp.eq.s32.totalorder %s20, 1
      %p101 = por %p99, %p100
      %p102 = scmp.ne.s32.totalorder %s93, %s94
      %p103 = scmp.eq.s32.totalorder %s20, 0
      %p104 = por %p102, %p103
      %p105 = scmp.ne.s32.totalorder %s93, %s94
      %p106 = scmp.eq.s32.totalorder %s21, 1
      %p107 = por %p105, %p106
      %p109 = scmp.ne.s32.totalorder %s94, %s108
      %p110 = scmp.eq.s32.totalorder %s21, 0
      %p111 = por %p109, %p110
      %s113 = sadd.s32 %s112, 1
      %p116 = scmp.eq.s32.totalorder %s15, 1
      %p117 = scmp.ne.s32.totalorder %s112, %s114
      %p118 = scmp.eq.s32.totalorder %s15, 0
      %p119 = por %p117, %p118
      %p120 = scmp.ne.s32.totalorder %s112, %s114
      %p121 = scmp.eq.s32.totalorder %s20, 1
      %p122 = por %p120, %p121
      %p123 = scmp.ne.s32.totalorder %s114, %s115
      %p124 = scmp.eq.s32.totalorder %s20, 0
      %p125 = por %p123, %p124
      %p126 = scmp.ne.s32.totalorder %s114, %s115
      %p127 = scmp.eq.s32.totalorder %s21, 1
      %p128 = por %p126, %p127
      %p130 = scmp.ne.s32.totalorder %s115, %s129
      %p131 = scmp.eq.s32.totalorder %s21, 0
      %p132 = por %p130, %p131
      %s134 = sadd.s32 %s133, 1
      %p137 = scmp.eq.s32.totalorder %s15, 1
      %p138 = scmp.ne.s32.totalorder %s133, %s135
      %p139 = scmp.eq.s32.totalorder %s15, 0
      %p140 = por %p138, %p139
      %p141 = scmp.ne.s32.totalorder %s133, %s135
      %p142 = scmp.eq.s32.totalorder %s20, 1
      %p143 = por %p141, %p142
      %p144 = scmp.ne.s32.totalorder %s135, %s136
      %p145 = scmp.eq.s32.totalorder %s20, 0
      %p146 = por %p144, %p145
      %p147 = scmp.ne.s32.totalorder %s135, %s136
      %p148 = scmp.eq.s32.totalorder %s21, 1
      %p149 = por %p147, %p148
      %p151 = scmp.ne.s32.totalorder %s136, %s150
      %p152 = scmp.eq.s32.totalorder %s21, 0
      %p153 = por %p151, %p152
      %s155 = sadd.s32 %s154, 1
      %p158 = scmp.eq.s32.totalorder %s15, 1
      %p159 = scmp.ne.s32.totalorder %s154, %s156
      %p160 = scmp.eq.s32.totalorder %s15, 0
      %p161 = por %p159, %p160
      %p162 = scmp.ne.s32.totalorder %s154, %s156
      %p163 = scmp.eq.s32.totalorder %s20, 1
      %p164 = por %p162, %p163
      %p165 = scmp.ne.s32.totalorder %s156, %s157
      %p166 = scmp.eq.s32.totalorder %s20, 0
      %p167 = por %p165, %p166
      %p168 = scmp.ne.s32.totalorder %s156, %s157
      %p169 = scmp.eq.s32.totalorder %s21, 1
      %p170 = por %p168, %p169
      %p172 = scmp.ne.s32.totalorder %s157, %s171
      %p173 = scmp.eq.s32.totalorder %s21, 0
      %p174 = por %p172, %p173
      %s176 = sadd.s32 %s175, 1
      %p179 = scmp.eq.s32.totalorder %s15, 1
      %p180 = scmp.ne.s32.totalorder %s175, %s177
      %p181 = scmp.eq.s32.totalorder %s15, 0
      %p182 = por %p180, %p181
      %p183 = scmp.ne.s32.totalorder %s175, %s177
      %p184 = scmp.eq.s32.totalorder %s20, 1
      %p185 = por %p183, %p184
      %p186 = scmp.ne.s32.totalorder %s177, %s178
      %p187 = scmp.eq.s32.totalorder %s20, 0
      %p188 = por %p186, %p187
      %p189 = scmp.ne.s32.totalorder %s177, %s178
      %p190 = scmp.eq.s32.totalorder %s21, 1
      %p191 = por %p189, %p190
      %p193 = scmp.ne.s32.totalorder %s178, %s192
      %p194 = scmp.eq.s32.totalorder %s21, 0
      %p195 = por %p193, %p194
      %s197 = sadd.s32 %s196, 1
      %p200 = scmp.eq.s32.totalorder %s15, 1
      %p201 = scmp.ne.s32.totalorder %s196, %s198
      %p202 = scmp.eq.s32.totalorder %s15, 0
      %p203 = por %p201, %p202
      %p204 = scmp.ne.s32.totalorder %s196, %s198
      %p205 = scmp.eq.s32.totalorder %s20, 1
      %p206 = por %p204, %p205
      %p207 = scmp.ne.s32.totalorder %s198, %s199
      %p208 = scmp.eq.s32.totalorder %s20, 0
      %p209 = por %p207, %p208
      %p210 = scmp.ne.s32.totalorder %s198, %s199
      %p211 = scmp.eq.s32.totalorder %s21, 1
      %p212 = por %p210, %p211
      %p214 = scmp.ne.s32.totalorder %s199, %s213
      %p215 = scmp.eq.s32.totalorder %s21, 0
      %p216 = por %p214, %p215
      %s217 = ssub.s32 %s15, %s22
      %p218 = scmp.eq.s32.totalorder %s217, 0
      %s220 = sadd.s32 %s219, 1
      %s221 = scalar_select %p218, %s219, %s220
      %p224 = pneg %p218
      %p225 = scmp.eq.s32.totalorder %s15, 1
      %p226 = por %p224, %p225
      %p227 = scmp.ne.s32.totalorder %s219, %s222
      %p228 = scmp.eq.s32.totalorder %s15, 0
      %p229 = por %p227, %p228
      %p230 = scmp.ne.s32.totalorder %s219, %s222
      %p231 = scmp.eq.s32.totalorder %s20, 1
      %p232 = por %p230, %p231
      %p233 = scmp.ne.s32.totalorder %s222, %s223
      %p234 = scmp.eq.s32.totalorder %s20, 0
      %p235 = por %p233, %p234
      %p236 = scmp.ne.s32.totalorder %s222, %s223
      %p237 = scmp.eq.s32.totalorder %s21, 1
      %p238 = por %p236, %p237
      %p240 = scmp.ne.s32.totalorder %s223, %s239
      %p241 = scmp.eq.s32.totalorder %s21, 0
      %p242 = por %p240, %p241
      %p243 = scmp.le.s32.totalorder 1, %s15
      %p244 = scmp.lt.s32.totalorder %s15, 3
      %p245 = pnand %p243, %p244
      %p246 = pneg %p245
      // Predicated region
      $region9: #{tpu_custom_call.1} parent=5 // pred_check
        _
      $region10: #{tpu_custom_call.1} parent=5 // pred_check_branch
        %248 = sbr.rel (%p245) target = $region12
      $region11: #{tpu_custom_call.1} parent=5 // pred_region
        %s249 = ssub.s32 %s15, 1
        // Predicated region
        $region13: #{tpu_custom_call.1} parent=11 // pred_check
          %p250 = pneg %p62
        $region14: #{tpu_custom_call.1} parent=11 // pred_check_branch
          %252 = sbr.rel (%p250) target = $region16
        $region15: #{tpu_custom_call.1} parent=11 // pred_region
          _
        $region16: #{tpu_custom_call.1} parent=11 // pred_fallthru
          _
        // Predicated region
        $region17: #{tpu_custom_call.1} parent=11 // pred_check
          %p253 = pneg %p83
        $region18: #{tpu_custom_call.1} parent=11 // pred_check_branch
          %255 = sbr.rel (%p253) target = $region20
        $region19: #{tpu_custom_call.1} parent=11 // pred_region
          _
        $region20: #{tpu_custom_call.1} parent=11 // pred_fallthru
          _
        // Predicated region
        $region21: #{tpu_custom_call.1} parent=11 // pred_check
          %p256 = pneg %p104
        $region22: #{tpu_custom_call.1} parent=11 // pred_check_branch
          %258 = sbr.rel (%p256) target = $region24
        $region23: #{tpu_custom_call.1} parent=11 // pred_region
          _
        $region24: #{tpu_custom_call.1} parent=11 // pred_fallthru
          _
        // Predicated region
        $region25: #{tpu_custom_call.1} parent=11 // pred_check
          %p259 = pneg %p125
        $region26: #{tpu_custom_call.1} parent=11 // pred_check_branch
          %261 = sbr.rel (%p259) target = $region28
        $region27: #{tpu_custom_call.1} parent=11 // pred_region
          _
        $region28: #{tpu_custom_call.1} parent=11 // pred_fallthru
          _
        // Predicated region
        $region29: #{tpu_custom_call.1} parent=11 // pred_check
          %p262 = pneg %p146
        $region30: #{tpu_custom_call.1} parent=11 // pred_check_branch
          %264 = sbr.rel (%p262) target = $region32
        $region31: #{tpu_custom_call.1} parent=11 // pred_region
          _
        $region32: #{tpu_custom_call.1} parent=11 // pred_fallthru
          _
        // Predicated region
        $region33: #{tpu_custom_call.1} parent=11 // pred_check
          %p265 = pneg %p167
        $region34: #{tpu_custom_call.1} parent=11 // pred_check_branch
          %267 = sbr.rel (%p265) target = $region36
        $region35: #{tpu_custom_call.1} parent=11 // pred_region
          _
        $region36: #{tpu_custom_call.1} parent=11 // pred_fallthru
          _
        // Predicated region
        $region37: #{tpu_custom_call.1} parent=11 // pred_check
          %p268 = pneg %p188
        $region38: #{tpu_custom_call.1} parent=11 // pred_check_branch
          %270 = sbr.rel (%p268) target = $region40
        $region39: #{tpu_custom_call.1} parent=11 // pred_region
          _
        $region40: #{tpu_custom_call.1} parent=11 // pred_fallthru
          _
        // Predicated region
        $region41: #{tpu_custom_call.1} parent=11 // pred_check
          %p271 = pneg %p209
        $region42: #{tpu_custom_call.1} parent=11 // pred_check_branch
          %273 = sbr.rel (%p271) target = $region44
        $region43: #{tpu_custom_call.1} parent=11 // pred_region
          _
        $region44: #{tpu_custom_call.1} parent=11 // pred_fallthru
          _
      $region12: #{tpu_custom_call.1} parent=5 // pred_fallthru
        _
      %p274 = scmp.lt.s32.totalorder %s15, 2
      // Predicated region
      $region45: #{tpu_custom_call.1} parent=5 // pred_check
        %p275 = pneg %p274
      $region46: #{tpu_custom_call.1} parent=5 // pred_check_branch
        %277 = sbr.rel (%p275) target = $region48
      $region47: #{tpu_custom_call.1} parent=5 // pred_region
        // Predicated region
        $region49: #{tpu_custom_call.1} parent=47 // pred_check
          %p278 = pneg %p35
        $region50: #{tpu_custom_call.1} parent=47 // pred_check_branch
          %280 = sbr.rel (%p278) target = $region52
        $region51: #{tpu_custom_call.1} parent=47 // pred_region
          %s281 = smul.u32 32, %s15
          %s282 = ssub.s32 38, %s281
          %p283 = scmp.lt.s32.totalorder %s282, 32
          %s284 = scalar_select %p283, %s282, 32
          %s285 = smul.u32 128, %s284
          %p286 = scmp.lt.s32.totalorder %s281, 37
          %s287 = scalar_select %p286, %s281, 37
          %s288 = smul.addr %s287, 8
          %s289 = scalar_lea.vmem %s0, %s288
          %s290 = smul.u32 32, %s15
          %s291 = ssub.s32 38, %s290
          %p292 = scmp.lt.s32.totalorder %s291, 32
          %s293 = scalar_select %p292, %s291, 32
          %s294 = smul.u32 128, %s293
        $region52: #{tpu_custom_call.1} parent=47 // pred_fallthru
          _
      $region48: #{tpu_custom_call.1} parent=5 // pred_fallthru
        _
      %p295 = scmp.le.s32.totalorder 1, %s15
      %p296 = scmp.lt.s32.totalorder %s15, 3
      %p297 = pnand %p295, %p296
      %p298 = pneg %p297
      // Predicated region
      $region53: #{tpu_custom_call.1} parent=5 // pred_check
        _
      $region54: #{tpu_custom_call.1} parent=5 // pred_check_branch
        %300 = sbr.rel (%p297) target = $region56
      $region55: #{tpu_custom_call.1} parent=5 // pred_region
        %s301 = ssub.s32 %s15, 1
        %s302 = smul.u32 32, %s20
        %s303 = ssub.s32 38, %s302
        %p304 = scmp.lt.s32.totalorder %s303, 32
        %s305 = scalar_select %p304, %s303, 32
        %s306 = smul.u32 128, %s305
        %p307 = scmp.lt.s32.totalorder %s302, 37
        %s308 = scalar_select %p307, %s302, 37
        %s309 = smul.addr %s308, 8
        %s310 = scalar_lea.vmem %s0, %s309
        %p311 = pneg %p41
        %p312 = pneg %p38
        %p313 = pneg %p62
        %p314 = pneg %p59
        %p315 = pneg %p83
        %p316 = pneg %p80
        %p317 = pneg %p104
        %p318 = pneg %p101
        %p319 = pneg %p125
        %p320 = pneg %p122
        %p321 = pneg %p146
        %p322 = pneg %p143
        %p323 = pneg %p167
        %p324 = pneg %p164
        %p325 = pneg %p188
        %p326 = pneg %p185
        %p327 = pneg %p209
        %p328 = pneg %p206
        %p329 = pneg %p235
        %p330 = pneg %p232
        %s331 = sand.u32 %s222, 1
        %s332 = sand.u32 %s222, 1
        %s333 = smul.addr %s332, 256
        %s334 = scalar_lea.vmem [#allocation2], %s333
        %s335 = smul.u32 32, %s20
        %s336 = ssub.s32 38, %s335
        %p337 = scmp.lt.s32.totalorder %s336, 32
        %s338 = scalar_select %p337, %s336, 32
        %s339 = smul.u32 128, %s338
        %p340 = scmp.lt.s32.totalorder %s335, 37
        %s341 = scalar_select %p340, %s335, 37
        %s342 = smul.addr %s341, 8
        %s343 = scalar_lea.vmem %s0, %s342
        %s344 = smul.u32 32, %s20
        %s345 = ssub.s32 38, %s344
        %p346 = scmp.lt.s32.totalorder %s345, 32
        %s347 = scalar_select %p346, %s345, 32
        %s348 = smul.u32 128, %s347
        %s349 = smul.u32 32, %s20
        %s350 = ssub.s32 38, %s349
        %p351 = scmp.lt.s32.totalorder %s350, 32
        %s352 = scalar_select %p351, %s350, 32
        %s353 = smul.u32 128, %s352
        %v354 = vld [vmem:[%s343] sm:$0xff]
        %v355 = vld [vmem:[%s343 + $0x8] sm:$0xff]
        %v356 = vld [vmem:[%s343 + $0x10] sm:$0xff]
        %v357 = vld [vmem:[%s343 + $0x18] sm:$0xff]
        %v358 = vld [vmem:[%s343 + $0x20] sm:$0xff]
        %v359 = vld [vmem:[%s343 + $0x28] sm:$0xff]
        %v360 = vld [vmem:[%s343 + $0x30] sm:$0xff]
        %v361 = vld [vmem:[%s343 + $0x38] sm:$0xff]
        %v362 = vld [vmem:[%s343 + $0x40] sm:$0xff]
        %v363 = vld [vmem:[%s343 + $0x48] sm:$0xff]
        %v364 = vld [vmem:[%s343 + $0x50] sm:$0xff]
        %v365 = vld [vmem:[%s343 + $0x58] sm:$0xff]
        %v366 = vld [vmem:[%s343 + $0x60] sm:$0xff]
        %v367 = vld [vmem:[%s343 + $0x68] sm:$0xff]
        %v368 = vld [vmem:[%s343 + $0x70] sm:$0xff]
        %v369 = vld [vmem:[%s343 + $0x78] sm:$0xff]
        %v370 = vld [vmem:[%s343 + $0x80] sm:$0xff]
        %v371 = vld [vmem:[%s343 + $0x88] sm:$0xff]
        %v372 = vld [vmem:[%s343 + $0x90] sm:$0xff]
        %v373 = vld [vmem:[%s343 + $0x98] sm:$0xff]
        %v374 = vld [vmem:[%s343 + $0xa0] sm:$0xff]
        %v375 = vld [vmem:[%s343 + $0xa8] sm:$0xff]
        %v376 = vld [vmem:[%s343 + $0xb0] sm:$0xff]
        %v377 = vld [vmem:[%s343 + $0xb8] sm:$0xff]
        %v378 = vld [vmem:[%s343 + $0xc0] sm:$0xff]
        %v379 = vld [vmem:[%s343 + $0xc8] sm:$0xff]
        %v380 = vld [vmem:[%s343 + $0xd0] sm:$0xff]
        %v381 = vld [vmem:[%s343 + $0xd8] sm:$0xff]
        %v382 = vld [vmem:[%s343 + $0xe0] sm:$0xff]
        %v383 = vld [vmem:[%s343 + $0xe8] sm:$0xff]
        %v384 = vld [vmem:[%s343 + $0xf0] sm:$0xff]
        %v385 = vld [vmem:[%s343 + $0xf8] sm:$0xff]
        %v386 = vld [vmem:[%s1] sm:$0xff]
        %v387 = vld [vmem:[%s1 + $0x8] sm:$0xff]
        %v388 = vld [vmem:[%s1 + $0x10] sm:$0xff]
        %v389 = vld [vmem:[%s1 + $0x18] sm:$0xff]
        %v390 = vld [vmem:[%s1 + $0x20] sm:$0xff]
        %v391 = vld [vmem:[%s1 + $0x28] sm:$0xff]
        %v392 = vld [vmem:[%s2] sm:$0xff]
        %v393 = vld [vmem:[%s2 + $0x8] sm:$0xff]
        %v394 = vld [vmem:[%s2 + $0x10] sm:$0xff]
        %v395 = vld [vmem:[%s2 + $0x18] sm:$0xff]
        %v396 = vld [vmem:[%s2 + $0x20] sm:$0xff]
        %v397 = vld [vmem:[%s2 + $0x28] sm:$0xff]
        %399 = vset.pattern.permute.xlu0 0
        %400 = vperm.xlu0 %399, %v392
        %v401 = vpop.permute.xlu0 %400
        %404 = vset.pattern.permute.xlu0 0
        %405 = vperm.xlu0 %404, %v393
        %v406 = vpop.permute.xlu0 %405
        %409 = vset.pattern.permute.xlu0 0
        %410 = vperm.xlu0 %409, %v394
        %v411 = vpop.permute.xlu0 %410
        %414 = vset.pattern.permute.xlu0 0
        %415 = vperm.xlu0 %414, %v395
        %v416 = vpop.permute.xlu0 %415
        %419 = vset.pattern.permute.xlu0 0
        %420 = vperm.xlu0 %419, %v396
        %v421 = vpop.permute.xlu0 %420
        %424 = vset.pattern.permute.xlu0 0
        %425 = vperm.xlu0 %424, %v397
        %v426 = vpop.permute.xlu0 %425
        %vm428 = vcmask 130048
        %v430 = vsel %vm428, %v386, 0
        %v433 = vsel %vm428, %v387, 0
        %v436 = vsel %vm428, %v388, 0
        %v439 = vsel %vm428, %v389, 0
        %v442 = vsel %vm428, %v390, 0
        %v445 = vsel %vm428, %v391, 0
        %v448 = vsel %vm428, %v354, 0
        %v451 = vsel %vm428, %v355, 0
        %v454 = vsel %vm428, %v356, 0
        %v457 = vsel %vm428, %v357, 0
        %v460 = vsel %vm428, %v358, 0
        %v463 = vsel %vm428, %v359, 0
        %v466 = vsel %vm428, %v360, 0
        %v469 = vsel %vm428, %v361, 0
        %v472 = vsel %vm428, %v362, 0
        %v475 = vsel %vm428, %v363, 0
        %v478 = vsel %vm428, %v364, 0
        %v481 = vsel %vm428, %v365, 0
        %v484 = vsel %vm428, %v366, 0
        %v487 = vsel %vm428, %v367, 0
        %v490 = vsel %vm428, %v368, 0
        %v493 = vsel %vm428, %v369, 0
        %v496 = vsel %vm428, %v370, 0
        %v499 = vsel %vm428, %v371, 0
        %v502 = vsel %vm428, %v372, 0
        %v505 = vsel %vm428, %v373, 0
        %v508 = vsel %vm428, %v374, 0
        %v511 = vsel %vm428, %v375, 0
        %v514 = vsel %vm428, %v376, 0
        %v517 = vsel %vm428, %v377, 0
        %v520 = vsel %vm428, %v378, 0
        %v523 = vsel %vm428, %v379, 0
        %v526 = vsel %vm428, %v380, 0
        %v529 = vsel %vm428, %v381, 0
        %v532 = vsel %vm428, %v382, 0
        %v535 = vsel %vm428, %v383, 0
        %v538 = vsel %vm428, %v384, 0
        %v541 = vsel %vm428, %v385, 0
        %543 = vmatprep.subr.mxu0 0.0
        %544 = vmatpush1.xpose.msra.mxu0 %v448
        %545 = vmatprep.subr.mxu0 0.0
        %546 = vmatpush1.xpose.msra.mxu0 %v451
        %547 = vmatprep.subr.mxu0 0.0
        %548 = vmatpush1.xpose.msra.mxu0 %v454
        %549 = vmatprep.subr.mxu0 0.0
        %550 = vmatpush1.xpose.msra.mxu0 %v457
        %551 = vmatprep.subr.mxu0 0.0
        %552 = vmatpush1.xpose.msra.mxu0 %v460
        %553 = vmatprep.subr.mxu0 0.0
        %554 = vmatpush1.xpose.msra.mxu0 %v463
        %555 = vmatprep.subr.mxu0 0.0
        %556 = vmatpush1.xpose.msra.mxu0 %v466
        %557 = vmatprep.subr.mxu0 0.0
        %558 = vmatpush1.xpose.msra.mxu0 %v469
        %559 = vmatprep.subr.mxu0 0.0
        %560 = vmatpush1.xpose.msra.mxu0 %v472
        %561 = vmatprep.subr.mxu0 0.0
        %562 = vmatpush1.xpose.msra.mxu0 %v475
        %563 = vmatprep.subr.mxu0 0.0
        %564 = vmatpush1.xpose.msra.mxu0 %v478
        %565 = vmatprep.subr.mxu0 0.0
        %566 = vmatpush1.xpose.msra.mxu0 %v481
        %567 = vmatprep.subr.mxu0 0.0
        %568 = vmatpush1.xpose.msra.mxu0 %v484
        %569 = vmatprep.subr.mxu0 0.0
        %570 = vmatpush1.xpose.msra.mxu0 %v487
        %571 = vmatprep.subr.mxu0 0.0
        %572 = vmatpush1.xpose.msra.mxu0 %v490
        %573 = vmatprep.subr.mxu0 0.0
        %574 = vmatpush1.xpose.msra.mxu0 %v493
        %575 = vmatprep.subr.mxu0 0.0
        %576 = vmatpush1.xpose.msra.mxu0 %v496
        %577 = vmatprep.subr.mxu0 0.0
        %578 = vmatpush1.xpose.msra.mxu0 %v499
        %579 = vmatprep.subr.mxu0 0.0
        %580 = vmatpush1.xpose.msra.mxu0 %v502
        %581 = vmatprep.subr.mxu0 0.0
        %582 = vmatpush1.xpose.msra.mxu0 %v505
        %583 = vmatprep.subr.mxu0 0.0
        %584 = vmatpush1.xpose.msra.mxu0 %v508
        %585 = vmatprep.subr.mxu0 0.0
        %586 = vmatpush1.xpose.msra.mxu0 %v511
        %587 = vmatprep.subr.mxu0 0.0
        %588 = vmatpush1.xpose.msra.mxu0 %v514
        %589 = vmatprep.subr.mxu0 0.0
        %590 = vmatpush1.xpose.msra.mxu0 %v517
        %591 = vmatprep.subr.mxu0 0.0
        %592 = vmatpush1.xpose.msra.mxu0 %v520
        %593 = vmatprep.subr.mxu0 0.0
        %594 = vmatpush1.xpose.msra.mxu0 %v523
        %595 = vmatprep.subr.mxu0 0.0
        %596 = vmatpush1.xpose.msra.mxu0 %v526
        %597 = vmatprep.subr.mxu0 0.0
        %598 = vmatpush1.xpose.msra.mxu0 %v529
        %599 = vmatprep.subr.mxu0 0.0
        %600 = vmatpush1.xpose.msra.mxu0 %v532
        %601 = vmatprep.subr.mxu0 0.0
        %602 = vmatpush1.xpose.msra.mxu0 %v535
        %603 = vmatprep.subr.mxu0 0.0
        %604 = vmatpush1.xpose.msra.mxu0 %v538
        %605 = vmatprep.subr.mxu0 0.0
        %606 = vmatpush1.xpose.msra.mxu0 %v541
        %607 = vmatprep.mubr.f32.mxu0 0.0
        %608 = vmatmul.mubr.f32.gmra.mrb[0].mxu0 %v430
        %v609 = vpop.f32.mrb[0].mxu0
        %v610 = vadd.f32 %v401, %v609
        %v611 = vpop.f32.mrb[0].mxu0
        %v612 = vadd.f32 %v401, %v611
        %613 = vmatprep.mubr.f32.mxu0 0.0
        %614 = vmatmul.mubr.f32.gmra.mrb[0].mxu0 %v433
        %v615 = vpop.f32.mrb[0].mxu0
        %v616 = vadd.f32 %v406, %v615
        %v617 = vpop.f32.mrb[0].mxu0
        %v618 = vadd.f32 %v406, %v617
        %619 = vmatprep.mubr.f32.mxu0 0.0
        %620 = vmatmul.mubr.f32.gmra.mrb[0].mxu0 %v436
        %v621 = vpop.f32.mrb[0].mxu0
        %v622 = vadd.f32 %v411, %v621
        %v623 = vpop.f32.mrb[0].mxu0
        %v624 = vadd.f32 %v411, %v623
        %625 = vmatprep.mubr.f32.mxu0 0.0
        %626 = vmatmul.mubr.f32.gmra.mrb[0].mxu0 %v439
        %v627 = vpop.f32.mrb[0].mxu0
        %v628 = vadd.f32 %v416, %v627
        %v629 = vpop.f32.mrb[0].mxu0
        %v630 = vadd.f32 %v416, %v629
        %631 = vmatprep.mubr.f32.mxu0 0.0
        %632 = vmatmul.mubr.f32.gmra.mrb[0].mxu0 %v442
        %v633 = vpop.f32.mrb[0].mxu0
        %v634 = vadd.f32 %v421, %v633
        %v635 = vpop.f32.mrb[0].mxu0
        %v636 = vadd.f32 %v421, %v635
        %637 = vmatprep.mubr.f32.mxu0 0.0
        %638 = vmatmul.mubr.f32.gmra.mrb[0].mxu0 %v445
        %v639 = vpop.f32.mrb[0].mxu0
        %v640 = vadd.f32 %v426, %v639
        %v641 = vpop.f32.mrb[0].mxu0
        %v642 = vadd.f32 %v426, %v641
        %643 = vdwg.mxu0
        %vm644 = vcmp.gt.f32.partialorder %v610, 20.0
        %vm645 = vcmp.gt.f32.partialorder %v612, 20.0
        %vm646 = vcmp.gt.f32.partialorder %v616, 20.0
        %vm647 = vcmp.gt.f32.partialorder %v618, 20.0
        %vm648 = vcmp.gt.f32.partialorder %v622, 20.0
        %vm649 = vcmp.gt.f32.partialorder %v624, 20.0
        %vm650 = vcmp.gt.f32.partialorder %v628, 20.0
        %vm651 = vcmp.gt.f32.partialorder %v630, 20.0
        %vm652 = vcmp.gt.f32.partialorder %v634, 20.0
        %vm653 = vcmp.gt.f32.partialorder %v636, 20.0
        %vm654 = vcmp.gt.f32.partialorder %v640, 20.0
        %vm655 = vcmp.gt.f32.partialorder %v642, 20.0
        %v656 = vmul.f32 %v610, 1.442695
        %v657 = vpow.pop %v656
        %v658 = vmul.f32 %v612, 1.442695
        %v659 = vpow.pop %v658
        %v660 = vmul.f32 %v616, 1.442695
        %v661 = vpow.pop %v660
        %v662 = vmul.f32 %v618, 1.442695
        %v663 = vpow.pop %v662
        %v664 = vmul.f32 %v622, 1.442695
        %v665 = vpow.pop %v664
        %v666 = vmul.f32 %v624, 1.442695
        %v667 = vpow.pop %v666
        %v668 = vmul.f32 %v628, 1.442695
        %v669 = vpow.pop %v668
        %v670 = vmul.f32 %v630, 1.442695
        %v671 = vpow.pop %v670
        %v672 = vmul.f32 %v634, 1.442695
        %v673 = vpow.pop %v672
        %v674 = vmul.f32 %v636, 1.442695
        %v675 = vpow.pop %v674
        %v676 = vmul.f32 %v640, 1.442695
        %v677 = vpow.pop %v676
        %v678 = vmul.f32 %v642, 1.442695
        %v679 = vpow.pop %v678
        %v680 = vadd.f32 %v657, 1.0
        %v681 = vlog2.pop %v680
        %v682 = vmul.f32 %v681, 0.6931472
        %v683 = vmul.f32 -0.5, %v657
        %v684 = vadd.f32 %v683, 1.0
        %v685 = vmul.f32 %v684, %v657
        %v686 = vand.u32 2147483647, %v657
        %vm687 = vcmp.lt.f32.partialorder %v686, 0.0004427343
        %v688 = vsel %vm687, %v685, %v682
        %v689 = vadd.f32 %v659, 1.0
        %v690 = vlog2.pop %v689
        %v691 = vmul.f32 %v690, 0.6931472
        %v692 = vmul.f32 -0.5, %v659
        %v693 = vadd.f32 %v692, 1.0
        %v694 = vmul.f32 %v693, %v659
        %v695 = vand.u32 2147483647, %v659
        %vm696 = vcmp.lt.f32.partialorder %v695, 0.0004427343
        %v697 = vsel %vm696, %v694, %v691
        %v698 = vadd.f32 %v661, 1.0
        %v699 = vlog2.pop %v698
        %v700 = vmul.f32 %v699, 0.6931472
        %v701 = vmul.f32 -0.5, %v661
        %v702 = vadd.f32 %v701, 1.0
        %v703 = vmul.f32 %v702, %v661
        %v704 = vand.u32 2147483647, %v661
        %vm705 = vcmp.lt.f32.partialorder %v704, 0.0004427343
        %v706 = vsel %vm705, %v703, %v700
        %v707 = vadd.f32 %v663, 1.0
        %v708 = vlog2.pop %v707
        %v709 = vmul.f32 %v708, 0.6931472
        %v710 = vmul.f32 -0.5, %v663
        %v711 = vadd.f32 %v710, 1.0
        %v712 = vmul.f32 %v711, %v663
        %v713 = vand.u32 2147483647, %v663
        %vm714 = vcmp.lt.f32.partialorder %v713, 0.0004427343
        %v715 = vsel %vm714, %v712, %v709
        %v716 = vadd.f32 %v665, 1.0
        %v717 = vlog2.pop %v716
        %v718 = vmul.f32 %v717, 0.6931472
        %v719 = vmul.f32 -0.5, %v665
        %v720 = vadd.f32 %v719, 1.0
        %v721 = vmul.f32 %v720, %v665
        %v722 = vand.u32 2147483647, %v665
        %vm723 = vcmp.lt.f32.partialorder %v722, 0.0004427343
        %v724 = vsel %vm723, %v721, %v718
        %v725 = vadd.f32 %v667, 1.0
        %v726 = vlog2.pop %v725
        %v727 = vmul.f32 %v726, 0.6931472
        %v728 = vmul.f32 -0.5, %v667
        %v729 = vadd.f32 %v728, 1.0
        %v730 = vmul.f32 %v729, %v667
        %v731 = vand.u32 2147483647, %v667
        %vm732 = vcmp.lt.f32.partialorder %v731, 0.0004427343
        %v733 = vsel %vm732, %v730, %v727
        %v734 = vadd.f32 %v669, 1.0
        %v735 = vlog2.pop %v734
        %v736 = vmul.f32 %v735, 0.6931472
        %v737 = vmul.f32 -0.5, %v669
        %v738 = vadd.f32 %v737, 1.0
        %v739 = vmul.f32 %v738, %v669
        %v740 = vand.u32 2147483647, %v669
        %vm741 = vcmp.lt.f32.partialorder %v740, 0.0004427343
        %v742 = vsel %vm741, %v739, %v736
        %v743 = vadd.f32 %v671, 1.0
        %v744 = vlog2.pop %v743
        %v745 = vmul.f32 %v744, 0.6931472
        %v746 = vmul.f32 -0.5, %v671
        %v747 = vadd.f32 %v746, 1.0
        %v748 = vmul.f32 %v747, %v671
        %v749 = vand.u32 2147483647, %v671
        %vm750 = vcmp.lt.f32.partialorder %v749, 0.0004427343
        %v751 = vsel %vm750, %v748, %v745
        %v752 = vadd.f32 %v673, 1.0
        %v753 = vlog2.pop %v752
        %v754 = vmul.f32 %v753, 0.6931472
        %v755 = vmul.f32 -0.5, %v673
        %v756 = vadd.f32 %v755, 1.0
        %v757 = vmul.f32 %v756, %v673
        %v758 = vand.u32 2147483647, %v673
        %vm759 = vcmp.lt.f32.partialorder %v758, 0.0004427343
        %v760 = vsel %vm759, %v757, %v754
        %v761 = vadd.f32 %v675, 1.0
        %v762 = vlog2.pop %v761
        %v763 = vmul.f32 %v762, 0.6931472
        %v764 = vmul.f32 -0.5, %v675
        %v765 = vadd.f32 %v764, 1.0
        %v766 = vmul.f32 %v765, %v675
        %v767 = vand.u32 2147483647, %v675
        %vm768 = vcmp.lt.f32.partialorder %v767, 0.0004427343
        %v769 = vsel %vm768, %v766, %v763
        %v770 = vadd.f32 %v677, 1.0
        %v771 = vlog2.pop %v770
        %v772 = vmul.f32 %v771, 0.6931472
        %v773 = vmul.f32 -0.5, %v677
        %v774 = vadd.f32 %v773, 1.0
        %v775 = vmul.f32 %v774, %v677
        %v776 = vand.u32 2147483647, %v677
        %vm777 = vcmp.lt.f32.partialorder %v776, 0.0004427343
        %v778 = vsel %vm777, %v775, %v772
        %v779 = vadd.f32 %v679, 1.0
        %v780 = vlog2.pop %v779
        %v781 = vmul.f32 %v780, 0.6931472
        %v782 = vmul.f32 -0.5, %v679
        %v783 = vadd.f32 %v782, 1.0
        %v784 = vmul.f32 %v783, %v679
        %v785 = vand.u32 2147483647, %v679
        %vm786 = vcmp.lt.f32.partialorder %v785, 0.0004427343
        %v787 = vsel %vm786, %v784, %v781
        %v788 = vsel %vm644, %v610, %v688
        %v789 = vsel %vm645, %v612, %v697
        %v790 = vsel %vm646, %v616, %v706
        %v791 = vsel %vm647, %v618, %v715
        %v792 = vsel %vm648, %v622, %v724
        %v793 = vsel %vm649, %v624, %v733
        %v794 = vsel %vm650, %v628, %v742
        %v795 = vsel %vm651, %v630, %v751
        %v796 = vsel %vm652, %v634, %v760
        %v797 = vsel %vm653, %v636, %v769
        %v798 = vsel %vm654, %v640, %v778
        %v799 = vsel %vm655, %v642, %v787
        %v800 = vld [vmem:[%s3] sm:$0xff]
        %v801 = vld [vmem:[%s3 + $0x8] sm:$0xff]
        %v802 = vld [vmem:[%s3 + $0x10] sm:$0xff]
        %v803 = vld [vmem:[%s3 + $0x18] sm:$0xff]
        %v804 = vld [vmem:[%s3 + $0x20] sm:$0xff]
        %v805 = vld [vmem:[%s3 + $0x28] sm:$0xff]
        %v806 = vld [vmem:[%s4] sm:$0xff]
        %v807 = vld [vmem:[%s4 + $0x8] sm:$0xff]
        %v808 = vld [vmem:[%s4 + $0x10] sm:$0xff]
        %v809 = vld [vmem:[%s4 + $0x18] sm:$0xff]
        %v810 = vld [vmem:[%s4 + $0x20] sm:$0xff]
        %v811 = vld [vmem:[%s4 + $0x28] sm:$0xff]
        %813 = vset.pattern.permute.xlu0 0
        %814 = vperm.xlu0 %813, %v806
        %v815 = vpop.permute.xlu0 %814
        %818 = vset.pattern.permute.xlu0 0
        %819 = vperm.xlu0 %818, %v807
        %v820 = vpop.permute.xlu0 %819
        %823 = vset.pattern.permute.xlu0 0
        %824 = vperm.xlu0 %823, %v808
        %v825 = vpop.permute.xlu0 %824
        %828 = vset.pattern.permute.xlu0 0
        %829 = vperm.xlu0 %828, %v809
        %v830 = vpop.permute.xlu0 %829
        %833 = vset.pattern.permute.xlu0 0
        %834 = vperm.xlu0 %833, %v810
        %v835 = vpop.permute.xlu0 %834
        %838 = vset.pattern.permute.xlu0 0
        %839 = vperm.xlu0 %838, %v811
        %v840 = vpop.permute.xlu0 %839
        %vm842 = vcmask 392192
        %v844 = vsel %vm842, %v800, 0
        %v847 = vsel %vm842, %v801, 0
        %v850 = vsel %vm842, %v802, 0
        %v853 = vsel %vm842, %v803, 0
        %v856 = vsel %vm842, %v804, 0
        %v859 = vsel %vm842, %v805, 0
        %861 = vmatprep.subr.mxu0 %v789
        %862 = vmatpush1.msra.mxu0 %v788
        %863 = vmatprep.subr.mxu0 %v791
        %864 = vmatpush1.msra.mxu0 %v790
        %865 = vmatprep.subr.mxu0 %v793
        %866 = vmatpush1.msra.mxu0 %v792
        %867 = vmatprep.subr.mxu0 %v795
        %868 = vmatpush1.msra.mxu0 %v794
        %869 = vmatprep.subr.mxu0 %v797
        %870 = vmatpush1.msra.mxu0 %v796
        %871 = vmatprep.subr.mxu0 %v799
        %872 = vmatpush1.msra.mxu0 %v798
        %873 = vmatprep.subr.mxu0 0.0
        %874 = vmatpush1.msra.mxu0 0.0
        %875 = vmatprep.subr.mxu0 0.0
        %876 = vmatpush1.msra.mxu0 0.0
        %877 = vmatprep.subr.mxu0 0.0
        %878 = vmatpush1.msra.mxu0 0.0
        %879 = vmatprep.subr.mxu0 0.0
        %880 = vmatpush1.msra.mxu0 0.0
        %881 = vmatprep.subr.mxu0 0.0
        %882 = vmatpush1.msra.mxu0 0.0
        %883 = vmatprep.subr.mxu0 0.0
        %884 = vmatpush1.msra.mxu0 0.0
        %885 = vmatprep.subr.mxu0 0.0
        %886 = vmatpush1.msra.mxu0 0.0
        %887 = vmatprep.subr.mxu0 0.0
        %888 = vmatpush1.msra.mxu0 0.0
        %889 = vmatprep.subr.mxu0 0.0
        %890 = vmatpush1.msra.mxu0 0.0
        %891 = vmatprep.subr.mxu0 0.0
        %892 = vmatpush1.msra.mxu0 0.0
        %893 = vmatprep.subr.mxu0 0.0
        %894 = vmatpush1.msra.mxu0 0.0
        %895 = vmatprep.subr.mxu0 0.0
        %896 = vmatpush1.msra.mxu0 0.0
        %897 = vmatprep.subr.mxu0 0.0
        %898 = vmatpush1.msra.mxu0 0.0
        %899 = vmatprep.subr.mxu0 0.0
        %900 = vmatpush1.msra.mxu0 0.0
        %901 = vmatprep.subr.mxu0 0.0
        %902 = vmatpush1.msra.mxu0 0.0
        %903 = vmatprep.subr.mxu0 0.0
        %904 = vmatpush1.msra.mxu0 0.0
        %905 = vmatprep.subr.mxu0 0.0
        %906 = vmatpush1.msra.mxu0 0.0
        %907 = vmatprep.subr.mxu0 0.0
        %908 = vmatpush1.msra.mxu0 0.0
        %909 = vmatprep.subr.mxu0 0.0
        %910 = vmatpush1.msra.mxu0 0.0
        %911 = vmatprep.subr.mxu0 0.0
        %912 = vmatpush1.msra.mxu0 0.0
        %913 = vmatprep.subr.mxu0 0.0
        %914 = vmatpush1.msra.mxu0 0.0
        %915 = vmatprep.subr.mxu0 0.0
        %916 = vmatpush1.msra.mxu0 0.0
        %917 = vmatprep.subr.mxu0 0.0
        %918 = vmatpush1.msra.mxu0 0.0
        %919 = vmatprep.subr.mxu0 0.0
        %920 = vmatpush1.msra.mxu0 0.0
        %921 = vmatprep.subr.mxu0 0.0
        %922 = vmatpush1.msra.mxu0 0.0
        %923 = vmatprep.subr.mxu0 0.0
        %924 = vmatpush1.msra.mxu0 0.0
        %925 = vmatprep.mubr.f32.mxu0 0.0
        %926 = vmatmul.mubr.f32.gmra.mrb[0].mxu0 %v844
        %v927 = vpop.f32.mrb[0].mxu0
        %v928 = vadd.f32 %v815, %v927
        %v929 = vpop.f32.mrb[0].mxu0
        %v930 = vadd.f32 %v815, %v929
        %931 = vmatprep.mubr.f32.mxu0 0.0
        %932 = vmatmul.mubr.f32.gmra.mrb[0].mxu0 %v847
        %v933 = vpop.f32.mrb[0].mxu0
        %v934 = vadd.f32 %v820, %v933
        %v935 = vpop.f32.mrb[0].mxu0
        %v936 = vadd.f32 %v820, %v935
        %937 = vmatprep.mubr.f32.mxu0 0.0
        %938 = vmatmul.mubr.f32.gmra.mrb[0].mxu0 %v850
        %v939 = vpop.f32.mrb[0].mxu0
        %v940 = vadd.f32 %v825, %v939
        %v941 = vpop.f32.mrb[0].mxu0
        %v942 = vadd.f32 %v825, %v941
        %943 = vmatprep.mubr.f32.mxu0 0.0
        %944 = vmatmul.mubr.f32.gmra.mrb[0].mxu0 %v853
        %v945 = vpop.f32.mrb[0].mxu0
        %v946 = vadd.f32 %v830, %v945
        %v947 = vpop.f32.mrb[0].mxu0
        %v948 = vadd.f32 %v830, %v947
        %949 = vmatprep.mubr.f32.mxu0 0.0
        %950 = vmatmul.mubr.f32.gmra.mrb[0].mxu0 %v856
        %v951 = vpop.f32.mrb[0].mxu0
        %v952 = vadd.f32 %v835, %v951
        %v953 = vpop.f32.mrb[0].mxu0
        %v954 = vadd.f32 %v835, %v953
        %955 = vmatprep.mubr.f32.mxu0 0.0
        %956 = vmatmul.mubr.f32.gmra.mrb[0].mxu0 %v859
        %v957 = vpop.f32.mrb[0].mxu0
        %v958 = vadd.f32 %v840, %v957
        %v959 = vpop.f32.mrb[0].mxu0
        %v960 = vadd.f32 %v840, %v959
        %961 = vdwg.mxu0
        %vm962 = vcmp.gt.f32.partialorder %v928, 20.0
        %vm963 = vcmp.gt.f32.partialorder %v930, 20.0
        %vm964 = vcmp.gt.f32.partialorder %v934, 20.0
        %vm965 = vcmp.gt.f32.partialorder %v936, 20.0
        %vm966 = vcmp.gt.f32.partialorder %v940, 20.0
        %vm967 = vcmp.gt.f32.partialorder %v942, 20.0
        %vm968 = vcmp.gt.f32.partialorder %v946, 20.0
        %vm969 = vcmp.gt.f32.partialorder %v948, 20.0
        %vm970 = vcmp.gt.f32.partialorder %v952, 20.0
        %vm971 = vcmp.gt.f32.partialorder %v954, 20.0
        %vm972 = vcmp.gt.f32.partialorder %v958, 20.0
        %vm973 = vcmp.gt.f32.partialorder %v960, 20.0
        %v974 = vmul.f32 %v928, 1.442695
        %v975 = vpow.pop %v974
        %v976 = vmul.f32 %v930, 1.442695
        %v977 = vpow.pop %v976
        %v978 = vmul.f32 %v934, 1.442695
        %v979 = vpow.pop %v978
        %v980 = vmul.f32 %v936, 1.442695
        %v981 = vpow.pop %v980
        %v982 = vmul.f32 %v940, 1.442695
        %v983 = vpow.pop %v982
        %v984 = vmul.f32 %v942, 1.442695
        %v985 = vpow.pop %v984
        %v986 = vmul.f32 %v946, 1.442695
        %v987 = vpow.pop %v986
        %v988 = vmul.f32 %v948, 1.442695
        %v989 = vpow.pop %v988
        %v990 = vmul.f32 %v952, 1.442695
        %v991 = vpow.pop %v990
        %v992 = vmul.f32 %v954, 1.442695
        %v993 = vpow.pop %v992
        %v994 = vmul.f32 %v958, 1.442695
        %v995 = vpow.pop %v994
        %v996 = vmul.f32 %v960, 1.442695
        %v997 = vpow.pop %v996
        %v998 = vadd.f32 %v975, 1.0
        %v999 = vlog2.pop %v998
        %v1000 = vmul.f32 %v999, 0.6931472
        %v1001 = vmul.f32 -0.5, %v975
        %v1002 = vadd.f32 %v1001, 1.0
        %v1003 = vmul.f32 %v1002, %v975
        %v1004 = vand.u32 2147483647, %v975
        %vm1005 = vcmp.lt.f32.partialorder %v1004, 0.0004427343
        %v1006 = vsel %vm1005, %v1003, %v1000
        %v1007 = vadd.f32 %v977, 1.0
        %v1008 = vlog2.pop %v1007
        %v1009 = vmul.f32 %v1008, 0.6931472
        %v1010 = vmul.f32 -0.5, %v977
        %v1011 = vadd.f32 %v1010, 1.0
        %v1012 = vmul.f32 %v1011, %v977
        %v1013 = vand.u32 2147483647, %v977
        %vm1014 = vcmp.lt.f32.partialorder %v1013, 0.0004427343
        %v1015 = vsel %vm1014, %v1012, %v1009
        %v1016 = vadd.f32 %v979, 1.0
        %v1017 = vlog2.pop %v1016
        %v1018 = vmul.f32 %v1017, 0.6931472
        %v1019 = vmul.f32 -0.5, %v979
        %v1020 = vadd.f32 %v1019, 1.0
        %v1021 = vmul.f32 %v1020, %v979
        %v1022 = vand.u32 2147483647, %v979
        %vm1023 = vcmp.lt.f32.partialorder %v1022, 0.0004427343
        %v1024 = vsel %vm1023, %v1021, %v1018
        %v1025 = vadd.f32 %v981, 1.0
        %v1026 = vlog2.pop %v1025
        %v1027 = vmul.f32 %v1026, 0.6931472
        %v1028 = vmul.f32 -0.5, %v981
        %v1029 = vadd.f32 %v1028, 1.0
        %v1030 = vmul.f32 %v1029, %v981
        %v1031 = vand.u32 2147483647, %v981
        %vm1032 = vcmp.lt.f32.partialorder %v1031, 0.0004427343
        %v1033 = vsel %vm1032, %v1030, %v1027
        %v1034 = vadd.f32 %v983, 1.0
        %v1035 = vlog2.pop %v1034
        %v1036 = vmul.f32 %v1035, 0.6931472
        %v1037 = vmul.f32 -0.5, %v983
        %v1038 = vadd.f32 %v1037, 1.0
        %v1039 = vmul.f32 %v1038, %v983
        %v1040 = vand.u32 2147483647, %v983
        %vm1041 = vcmp.lt.f32.partialorder %v1040, 0.0004427343
        %v1042 = vsel %vm1041, %v1039, %v1036
        %v1043 = vadd.f32 %v985, 1.0
        %v1044 = vlog2.pop %v1043
        %v1045 = vmul.f32 %v1044, 0.6931472
        %v1046 = vmul.f32 -0.5, %v985
        %v1047 = vadd.f32 %v1046, 1.0
        %v1048 = vmul.f32 %v1047, %v985
        %v1049 = vand.u32 2147483647, %v985
        %vm1050 = vcmp.lt.f32.partialorder %v1049, 0.0004427343
        %v1051 = vsel %vm1050, %v1048, %v1045
        %v1052 = vadd.f32 %v987, 1.0
        %v1053 = vlog2.pop %v1052
        %v1054 = vmul.f32 %v1053, 0.6931472
        %v1055 = vmul.f32 -0.5, %v987
        %v1056 = vadd.f32 %v1055, 1.0
        %v1057 = vmul.f32 %v1056, %v987
        %v1058 = vand.u32 2147483647, %v987
        %vm1059 = vcmp.lt.f32.partialorder %v1058, 0.0004427343
        %v1060 = vsel %vm1059, %v1057, %v1054
        %v1061 = vadd.f32 %v989, 1.0
        %v1062 = vlog2.pop %v1061
        %v1063 = vmul.f32 %v1062, 0.6931472
        %v1064 = vmul.f32 -0.5, %v989
        %v1065 = vadd.f32 %v1064, 1.0
        %v1066 = vmul.f32 %v1065, %v989
        %v1067 = vand.u32 2147483647, %v989
        %vm1068 = vcmp.lt.f32.partialorder %v1067, 0.0004427343
        %v1069 = vsel %vm1068, %v1066, %v1063
        %v1070 = vadd.f32 %v991, 1.0
        %v1071 = vlog2.pop %v1070
        %v1072 = vmul.f32 %v1071, 0.6931472
        %v1073 = vmul.f32 -0.5, %v991
        %v1074 = vadd.f32 %v1073, 1.0
        %v1075 = vmul.f32 %v1074, %v991
        %v1076 = vand.u32 2147483647, %v991
        %vm1077 = vcmp.lt.f32.partialorder %v1076, 0.0004427343
        %v1078 = vsel %vm1077, %v1075, %v1072
        %v1079 = vadd.f32 %v993, 1.0
        %v1080 = vlog2.pop %v1079
        %v1081 = vmul.f32 %v1080, 0.6931472
        %v1082 = vmul.f32 -0.5, %v993
        %v1083 = vadd.f32 %v1082, 1.0
        %v1084 = vmul.f32 %v1083, %v993
        %v1085 = vand.u32 2147483647, %v993
        %vm1086 = vcmp.lt.f32.partialorder %v1085, 0.0004427343
        %v1087 = vsel %vm1086, %v1084, %v1081
        %v1088 = vadd.f32 %v995, 1.0
        %v1089 = vlog2.pop %v1088
        %v1090 = vmul.f32 %v1089, 0.6931472
        %v1091 = vmul.f32 -0.5, %v995
        %v1092 = vadd.f32 %v1091, 1.0
        %v1093 = vmul.f32 %v1092, %v995
        %v1094 = vand.u32 2147483647, %v995
        %vm1095 = vcmp.lt.f32.partialorder %v1094, 0.0004427343
        %v1096 = vsel %vm1095, %v1093, %v1090
        %v1097 = vadd.f32 %v997, 1.0
        %v1098 = vlog2.pop %v1097
        %v1099 = vmul.f32 %v1098, 0.6931472
        %v1100 = vmul.f32 -0.5, %v997
        %v1101 = vadd.f32 %v1100, 1.0
        %v1102 = vmul.f32 %v1101, %v997
        %v1103 = vand.u32 2147483647, %v997
        %vm1104 = vcmp.lt.f32.partialorder %v1103, 0.0004427343
        %v1105 = vsel %vm1104, %v1102, %v1099
        %v1106 = vsel %vm962, %v928, %v1006
        %v1107 = vsel %vm963, %v930, %v1015
        %v1108 = vsel %vm964, %v934, %v1024
        %v1109 = vsel %vm965, %v936, %v1033
        %v1110 = vsel %vm966, %v940, %v1042
        %v1111 = vsel %vm967, %v942, %v1051
        %v1112 = vsel %vm968, %v946, %v1060
        %v1113 = vsel %vm969, %v948, %v1069
        %v1114 = vsel %vm970, %v952, %v1078
        %v1115 = vsel %vm971, %v954, %v1087
        %v1116 = vsel %vm972, %v958, %v1096
        %v1117 = vsel %vm973, %v960, %v1105
        %v1118 = vld [vmem:[%s5] sm:$0xff]
        %v1119 = vld [vmem:[%s5 + $0x8] sm:$0xff]
        %v1120 = vld [vmem:[%s5 + $0x10] sm:$0xff]
        %v1121 = vld [vmem:[%s5 + $0x18] sm:$0xff]
        %v1122 = vld [vmem:[%s5 + $0x20] sm:$0xff]
        %v1123 = vld [vmem:[%s5 + $0x28] sm:$0xff]
        %v1124 = vld [vmem:[%s6] sm:$0xff]
        %v1125 = vld [vmem:[%s6 + $0x8] sm:$0xff]
        %v1126 = vld [vmem:[%s6 + $0x10] sm:$0xff]
        %v1127 = vld [vmem:[%s6 + $0x18] sm:$0xff]
        %v1128 = vld [vmem:[%s6 + $0x20] sm:$0xff]
        %v1129 = vld [vmem:[%s6 + $0x28] sm:$0xff]
        %1131 = vset.pattern.permute.xlu0 0
        %1132 = vperm.xlu0 %1131, %v1124
        %v1133 = vpop.permute.xlu0 %1132
        %1136 = vset.pattern.permute.xlu0 0
        %1137 = vperm.xlu0 %1136, %v1125
        %v1138 = vpop.permute.xlu0 %1137
        %1141 = vset.pattern.permute.xlu0 0
        %1142 = vperm.xlu0 %1141, %v1126
        %v1143 = vpop.permute.xlu0 %1142
        %1146 = vset.pattern.permute.xlu0 0
        %1147 = vperm.xlu0 %1146, %v1127
        %v1148 = vpop.permute.xlu0 %1147
        %1151 = vset.pattern.permute.xlu0 0
        %1152 = vperm.xlu0 %1151, %v1128
        %v1153 = vpop.permute.xlu0 %1152
        %1156 = vset.pattern.permute.xlu0 0
        %1157 = vperm.xlu0 %1156, %v1129
        %v1158 = vpop.permute.xlu0 %1157
        %v1161 = vsel %vm842, %v1118, 0
        %v1164 = vsel %vm842, %v1119, 0
        %v1167 = vsel %vm842, %v1120, 0
        %v1170 = vsel %vm842, %v1121, 0
        %v1173 = vsel %vm842, %v1122, 0
        %v1176 = vsel %vm842, %v1123, 0
        %1178 = vmatprep.subr.mxu0 %v1107
        %1179 = vmatpush1.msra.mxu0 %v1106
        %1180 = vmatprep.subr.mxu0 %v1109
        %1181 = vmatpush1.msra.mxu0 %v1108
        %1182 = vmatprep.subr.mxu0 %v1111
        %1183 = vmatpush1.msra.mxu0 %v1110
        %1184 = vmatprep.subr.mxu0 %v1113
        %1185 = vmatpush1.msra.mxu0 %v1112
        %1186 = vmatprep.subr.mxu0 %v1115
        %1187 = vmatpush1.msra.mxu0 %v1114
        %1188 = vmatprep.subr.mxu0 %v1117
        %1189 = vmatpush1.msra.mxu0 %v1116
        %1190 = vmatprep.subr.mxu0 0.0
        %1191 = vmatpush1.msra.mxu0 0.0
        %1192 = vmatprep.subr.mxu0 0.0
        %1193 = vmatpush1.msra.mxu0 0.0
        %1194 = vmatprep.subr.mxu0 0.0
        %1195 = vmatpush1.msra.mxu0 0.0
        %1196 = vmatprep.subr.mxu0 0.0
        %1197 = vmatpush1.msra.mxu0 0.0
        %1198 = vmatprep.subr.mxu0 0.0
        %1199 = vmatpush1.msra.mxu0 0.0
        %1200 = vmatprep.subr.mxu0 0.0
        %1201 = vmatpush1.msra.mxu0 0.0
        %1202 = vmatprep.subr.mxu0 0.0
        %1203 = vmatpush1.msra.mxu0 0.0
        %1204 = vmatprep.subr.mxu0 0.0
        %1205 = vmatpush1.msra.mxu0 0.0
        %1206 = vmatprep.subr.mxu0 0.0
        %1207 = vmatpush1.msra.mxu0 0.0
        %1208 = vmatprep.subr.mxu0 0.0
        %1209 = vmatpush1.msra.mxu0 0.0
        %1210 = vmatprep.subr.mxu0 0.0
        %1211 = vmatpush1.msra.mxu0 0.0
        %1212 = vmatprep.subr.mxu0 0.0
        %1213 = vmatpush1.msra.mxu0 0.0
        %1214 = vmatprep.subr.mxu0 0.0
        %1215 = vmatpush1.msra.mxu0 0.0
        %1216 = vmatprep.subr.mxu0 0.0
        %1217 = vmatpush1.msra.mxu0 0.0
        %1218 = vmatprep.subr.mxu0 0.0
        %1219 = vmatpush1.msra.mxu0 0.0
        %1220 = vmatprep.subr.mxu0 0.0
        %1221 = vmatpush1.msra.mxu0 0.0
        %1222 = vmatprep.subr.mxu0 0.0
        %1223 = vmatpush1.msra.mxu0 0.0
        %1224 = vmatprep.subr.mxu0 0.0
        %1225 = vmatpush1.msra.mxu0 0.0
        %1226 = vmatprep.subr.mxu0 0.0
        %1227 = vmatpush1.msra.mxu0 0.0
        %1228 = vmatprep.subr.mxu0 0.0
        %1229 = vmatpush1.msra.mxu0 0.0
        %1230 = vmatprep.subr.mxu0 0.0
        %1231 = vmatpush1.msra.mxu0 0.0
        %1232 = vmatprep.subr.mxu0 0.0
        %1233 = vmatpush1.msra.mxu0 0.0
        %1234 = vmatprep.subr.mxu0 0.0
        %1235 = vmatpush1.msra.mxu0 0.0
        %1236 = vmatprep.subr.mxu0 0.0
        %1237 = vmatpush1.msra.mxu0 0.0
        %1238 = vmatprep.subr.mxu0 0.0
        %1239 = vmatpush1.msra.mxu0 0.0
        %1240 = vmatprep.subr.mxu0 0.0
        %1241 = vmatpush1.msra.mxu0 0.0
        %1242 = vmatprep.mubr.f32.mxu0 0.0
        %1243 = vmatmul.mubr.f32.gmra.mrb[0].mxu0 %v1161
        %v1244 = vpop.f32.mrb[0].mxu0
        %v1245 = vadd.f32 %v1133, %v1244
        %v1246 = vpop.f32.mrb[0].mxu0
        %v1247 = vadd.f32 %v1133, %v1246
        %1248 = vmatprep.mubr.f32.mxu0 0.0
        %1249 = vmatmul.mubr.f32.gmra.mrb[0].mxu0 %v1164
        %v1250 = vpop.f32.mrb[0].mxu0
        %v1251 = vadd.f32 %v1138, %v1250
        %v1252 = vpop.f32.mrb[0].mxu0
        %v1253 = vadd.f32 %v1138, %v1252
        %1254 = vmatprep.mubr.f32.mxu0 0.0
        %1255 = vmatmul.mubr.f32.gmra.mrb[0].mxu0 %v1167
        %v1256 = vpop.f32.mrb[0].mxu0
        %v1257 = vadd.f32 %v1143, %v1256
        %v1258 = vpop.f32.mrb[0].mxu0
        %v1259 = vadd.f32 %v1143, %v1258
        %1260 = vmatprep.mubr.f32.mxu0 0.0
        %1261 = vmatmul.mubr.f32.gmra.mrb[0].mxu0 %v1170
        %v1262 = vpop.f32.mrb[0].mxu0
        %v1263 = vadd.f32 %v1148, %v1262
        %v1264 = vpop.f32.mrb[0].mxu0
        %v1265 = vadd.f32 %v1148, %v1264
        %1266 = vmatprep.mubr.f32.mxu0 0.0
        %1267 = vmatmul.mubr.f32.gmra.mrb[0].mxu0 %v1173
        %v1268 = vpop.f32.mrb[0].mxu0
        %v1269 = vadd.f32 %v1153, %v1268
        %v1270 = vpop.f32.mrb[0].mxu0
        %v1271 = vadd.f32 %v1153, %v1270
        %1272 = vmatprep.mubr.f32.mxu0 0.0
        %1273 = vmatmul.mubr.f32.gmra.mrb[0].mxu0 %v1176
        %v1274 = vpop.f32.mrb[0].mxu0
        %v1275 = vadd.f32 %v1158, %v1274
        %v1276 = vpop.f32.mrb[0].mxu0
        %v1277 = vadd.f32 %v1158, %v1276
        %1278 = vdwg.mxu0
        %vm1279 = vcmp.gt.f32.partialorder %v1245, 20.0
        %vm1280 = vcmp.gt.f32.partialorder %v1247, 20.0
        %vm1281 = vcmp.gt.f32.partialorder %v1251, 20.0
        %vm1282 = vcmp.gt.f32.partialorder %v1253, 20.0
        %vm1283 = vcmp.gt.f32.partialorder %v1257, 20.0
        %vm1284 = vcmp.gt.f32.partialorder %v1259, 20.0
        %vm1285 = vcmp.gt.f32.partialorder %v1263, 20.0
        %vm1286 = vcmp.gt.f32.partialorder %v1265, 20.0
        %vm1287 = vcmp.gt.f32.partialorder %v1269, 20.0
        %vm1288 = vcmp.gt.f32.partialorder %v1271, 20.0
        %vm1289 = vcmp.gt.f32.partialorder %v1275, 20.0
        %vm1290 = vcmp.gt.f32.partialorder %v1277, 20.0
        %v1291 = vmul.f32 %v1245, 1.442695
        %v1292 = vpow.pop %v1291
        %v1293 = vmul.f32 %v1247, 1.442695
        %v1294 = vpow.pop %v1293
        %v1295 = vmul.f32 %v1251, 1.442695
        %v1296 = vpow.pop %v1295
        %v1297 = vmul.f32 %v1253, 1.442695
        %v1298 = vpow.pop %v1297
        %v1299 = vmul.f32 %v1257, 1.442695
        %v1300 = vpow.pop %v1299
        %v1301 = vmul.f32 %v1259, 1.442695
        %v1302 = vpow.pop %v1301
        %v1303 = vmul.f32 %v1263, 1.442695
        %v1304 = vpow.pop %v1303
        %v1305 = vmul.f32 %v1265, 1.442695
        %v1306 = vpow.pop %v1305
        %v1307 = vmul.f32 %v1269, 1.442695
        %v1308 = vpow.pop %v1307
        %v1309 = vmul.f32 %v1271, 1.442695
        %v1310 = vpow.pop %v1309
        %v1311 = vmul.f32 %v1275, 1.442695
        %v1312 = vpow.pop %v1311
        %v1313 = vmul.f32 %v1277, 1.442695
        %v1314 = vpow.pop %v1313
        %v1315 = vadd.f32 %v1292, 1.0
        %v1316 = vlog2.pop %v1315
        %v1317 = vmul.f32 %v1316, 0.6931472
        %v1318 = vmul.f32 -0.5, %v1292
        %v1319 = vadd.f32 %v1318, 1.0
        %v1320 = vmul.f32 %v1319, %v1292
        %v1321 = vand.u32 2147483647, %v1292
        %vm1322 = vcmp.lt.f32.partialorder %v1321, 0.0004427343
        %v1323 = vsel %vm1322, %v1320, %v1317
        %v1324 = vadd.f32 %v1294, 1.0
        %v1325 = vlog2.pop %v1324
        %v1326 = vmul.f32 %v1325, 0.6931472
        %v1327 = vmul.f32 -0.5, %v1294
        %v1328 = vadd.f32 %v1327, 1.0
        %v1329 = vmul.f32 %v1328, %v1294
        %v1330 = vand.u32 2147483647, %v1294
        %vm1331 = vcmp.lt.f32.partialorder %v1330, 0.0004427343
        %v1332 = vsel %vm1331, %v1329, %v1326
        %v1333 = vadd.f32 %v1296, 1.0
        %v1334 = vlog2.pop %v1333
        %v1335 = vmul.f32 %v1334, 0.6931472
        %v1336 = vmul.f32 -0.5, %v1296
        %v1337 = vadd.f32 %v1336, 1.0
        %v1338 = vmul.f32 %v1337, %v1296
        %v1339 = vand.u32 2147483647, %v1296
        %vm1340 = vcmp.lt.f32.partialorder %v1339, 0.0004427343
        %v1341 = vsel %vm1340, %v1338, %v1335
        %v1342 = vadd.f32 %v1298, 1.0
        %v1343 = vlog2.pop %v1342
        %v1344 = vmul.f32 %v1343, 0.6931472
        %v1345 = vmul.f32 -0.5, %v1298
        %v1346 = vadd.f32 %v1345, 1.0
        %v1347 = vmul.f32 %v1346, %v1298
        %v1348 = vand.u32 2147483647, %v1298
        %vm1349 = vcmp.lt.f32.partialorder %v1348, 0.0004427343
        %v1350 = vsel %vm1349, %v1347, %v1344
        %v1351 = vadd.f32 %v1300, 1.0
        %v1352 = vlog2.pop %v1351
        %v1353 = vmul.f32 %v1352, 0.6931472
        %v1354 = vmul.f32 -0.5, %v1300
        %v1355 = vadd.f32 %v1354, 1.0
        %v1356 = vmul.f32 %v1355, %v1300
        %v1357 = vand.u32 2147483647, %v1300
        %vm1358 = vcmp.lt.f32.partialorder %v1357, 0.0004427343
        %v1359 = vsel %vm1358, %v1356, %v1353
        %v1360 = vadd.f32 %v1302, 1.0
        %v1361 = vlog2.pop %v1360
        %v1362 = vmul.f32 %v1361, 0.6931472
        %v1363 = vmul.f32 -0.5, %v1302
        %v1364 = vadd.f32 %v1363, 1.0
        %v1365 = vmul.f32 %v1364, %v1302
        %v1366 = vand.u32 2147483647, %v1302
        %vm1367 = vcmp.lt.f32.partialorder %v1366, 0.0004427343
        %v1368 = vsel %vm1367, %v1365, %v1362
        %v1369 = vadd.f32 %v1304, 1.0
        %v1370 = vlog2.pop %v1369
        %v1371 = vmul.f32 %v1370, 0.6931472
        %v1372 = vmul.f32 -0.5, %v1304
        %v1373 = vadd.f32 %v1372, 1.0
        %v1374 = vmul.f32 %v1373, %v1304
        %v1375 = vand.u32 2147483647, %v1304
        %vm1376 = vcmp.lt.f32.partialorder %v1375, 0.0004427343
        %v1377 = vsel %vm1376, %v1374, %v1371
        %v1378 = vadd.f32 %v1306, 1.0
        %v1379 = vlog2.pop %v1378
        %v1380 = vmul.f32 %v1379, 0.6931472
        %v1381 = vmul.f32 -0.5, %v1306
        %v1382 = vadd.f32 %v1381, 1.0
        %v1383 = vmul.f32 %v1382, %v1306
        %v1384 = vand.u32 2147483647, %v1306
        %vm1385 = vcmp.lt.f32.partialorder %v1384, 0.0004427343
        %v1386 = vsel %vm1385, %v1383, %v1380
        %v1387 = vadd.f32 %v1308, 1.0
        %v1388 = vlog2.pop %v1387
        %v1389 = vmul.f32 %v1388, 0.6931472
        %v1390 = vmul.f32 -0.5, %v1308
        %v1391 = vadd.f32 %v1390, 1.0
        %v1392 = vmul.f32 %v1391, %v1308
        %v1393 = vand.u32 2147483647, %v1308
        %vm1394 = vcmp.lt.f32.partialorder %v1393, 0.0004427343
        %v1395 = vsel %vm1394, %v1392, %v1389
        %v1396 = vadd.f32 %v1310, 1.0
        %v1397 = vlog2.pop %v1396
        %v1398 = vmul.f32 %v1397, 0.6931472
        %v1399 = vmul.f32 -0.5, %v1310
        %v1400 = vadd.f32 %v1399, 1.0
        %v1401 = vmul.f32 %v1400, %v1310
        %v1402 = vand.u32 2147483647, %v1310
        %vm1403 = vcmp.lt.f32.partialorder %v1402, 0.0004427343
        %v1404 = vsel %vm1403, %v1401, %v1398
        %v1405 = vadd.f32 %v1312, 1.0
        %v1406 = vlog2.pop %v1405
        %v1407 = vmul.f32 %v1406, 0.6931472
        %v1408 = vmul.f32 -0.5, %v1312
        %v1409 = vadd.f32 %v1408, 1.0
        %v1410 = vmul.f32 %v1409, %v1312
        %v1411 = vand.u32 2147483647, %v1312
        %vm1412 = vcmp.lt.f32.partialorder %v1411, 0.0004427343
        %v1413 = vsel %vm1412, %v1410, %v1407
        %v1414 = vadd.f32 %v1314, 1.0
        %v1415 = vlog2.pop %v1414
        %v1416 = vmul.f32 %v1415, 0.6931472
        %v1417 = vmul.f32 -0.5, %v1314
        %v1418 = vadd.f32 %v1417, 1.0
        %v1419 = vmul.f32 %v1418, %v1314
        %v1420 = vand.u32 2147483647, %v1314
        %vm1421 = vcmp.lt.f32.partialorder %v1420, 0.0004427343
        %v1422 = vsel %vm1421, %v1419, %v1416
        %v1423 = vsel %vm1279, %v1245, %v1323
        %v1424 = vsel %vm1280, %v1247, %v1332
        %v1425 = vsel %vm1281, %v1251, %v1341
        %v1426 = vsel %vm1282, %v1253, %v1350
        %v1427 = vsel %vm1283, %v1257, %v1359
        %v1428 = vsel %vm1284, %v1259, %v1368
        %v1429 = vsel %vm1285, %v1263, %v1377
        %v1430 = vsel %vm1286, %v1265, %v1386
        %v1431 = vsel %vm1287, %v1269, %v1395
        %v1432 = vsel %vm1288, %v1271, %v1404
        %v1433 = vsel %vm1289, %v1275, %v1413
        %v1434 = vsel %vm1290, %v1277, %v1422
        %v1435 = vld [vmem:[%s7] sm:$0xff]
        %v1436 = vld [vmem:[%s7 + $0x8] sm:$0xff]
        %v1437 = vld [vmem:[%s7 + $0x10] sm:$0xff]
        %v1438 = vld [vmem:[%s7 + $0x18] sm:$0xff]
        %v1439 = vld [vmem:[%s7 + $0x20] sm:$0xff]
        %v1440 = vld [vmem:[%s7 + $0x28] sm:$0xff]
        %v1441 = vld [vmem:[%s8] sm:$0xff]
        %v1442 = vld [vmem:[%s8 + $0x8] sm:$0xff]
        %v1443 = vld [vmem:[%s8 + $0x10] sm:$0xff]
        %v1444 = vld [vmem:[%s8 + $0x18] sm:$0xff]
        %v1445 = vld [vmem:[%s8 + $0x20] sm:$0xff]
        %v1446 = vld [vmem:[%s8 + $0x28] sm:$0xff]
        %1448 = vset.pattern.permute.xlu0 0
        %1449 = vperm.xlu0 %1448, %v1441
        %v1450 = vpop.permute.xlu0 %1449
        %1453 = vset.pattern.permute.xlu0 0
        %1454 = vperm.xlu0 %1453, %v1442
        %v1455 = vpop.permute.xlu0 %1454
        %1458 = vset.pattern.permute.xlu0 0
        %1459 = vperm.xlu0 %1458, %v1443
        %v1460 = vpop.permute.xlu0 %1459
        %1463 = vset.pattern.permute.xlu0 0
        %1464 = vperm.xlu0 %1463, %v1444
        %v1465 = vpop.permute.xlu0 %1464
        %1468 = vset.pattern.permute.xlu0 0
        %1469 = vperm.xlu0 %1468, %v1445
        %v1470 = vpop.permute.xlu0 %1469
        %1473 = vset.pattern.permute.xlu0 0
        %1474 = vperm.xlu0 %1473, %v1446
        %v1475 = vpop.permute.xlu0 %1474
        %v1478 = vsel %vm842, %v1435, 0
        %v1481 = vsel %vm842, %v1436, 0
        %v1484 = vsel %vm842, %v1437, 0
        %v1487 = vsel %vm842, %v1438, 0
        %v1490 = vsel %vm842, %v1439, 0
        %v1493 = vsel %vm842, %v1440, 0
        %1495 = vmatprep.subr.mxu0 %v1424
        %1496 = vmatpush1.msra.mxu0 %v1423
        %1497 = vmatprep.subr.mxu0 %v1426
        %1498 = vmatpush1.msra.mxu0 %v1425
        %1499 = vmatprep.subr.mxu0 %v1428
        %1500 = vmatpush1.msra.mxu0 %v1427
        %1501 = vmatprep.subr.mxu0 %v1430
        %1502 = vmatpush1.msra.mxu0 %v1429
        %1503 = vmatprep.subr.mxu0 %v1432
        %1504 = vmatpush1.msra.mxu0 %v1431
        %1505 = vmatprep.subr.mxu0 %v1434
        %1506 = vmatpush1.msra.mxu0 %v1433
        %1507 = vmatprep.subr.mxu0 0.0
        %1508 = vmatpush1.msra.mxu0 0.0
        %1509 = vmatprep.subr.mxu0 0.0
        %1510 = vmatpush1.msra.mxu0 0.0
        %1511 = vmatprep.subr.mxu0 0.0
        %1512 = vmatpush1.msra.mxu0 0.0
        %1513 = vmatprep.subr.mxu0 0.0
        %1514 = vmatpush1.msra.mxu0 0.0
        %1515 = vmatprep.subr.mxu0 0.0
        %1516 = vmatpush1.msra.mxu0 0.0
        %1517 = vmatprep.subr.mxu0 0.0
        %1518 = vmatpush1.msra.mxu0 0.0
        %1519 = vmatprep.subr.mxu0 0.0
        %1520 = vmatpush1.msra.mxu0 0.0
        %1521 = vmatprep.subr.mxu0 0.0
        %1522 = vmatpush1.msra.mxu0 0.0
        %1523 = vmatprep.subr.mxu0 0.0
        %1524 = vmatpush1.msra.mxu0 0.0
        %1525 = vmatprep.subr.mxu0 0.0
        %1526 = vmatpush1.msra.mxu0 0.0
        %1527 = vmatprep.subr.mxu0 0.0
        %1528 = vmatpush1.msra.mxu0 0.0
        %1529 = vmatprep.subr.mxu0 0.0
        %1530 = vmatpush1.msra.mxu0 0.0
        %1531 = vmatprep.subr.mxu0 0.0
        %1532 = vmatpush1.msra.mxu0 0.0
        %1533 = vmatprep.subr.mxu0 0.0
        %1534 = vmatpush1.msra.mxu0 0.0
        %1535 = vmatprep.subr.mxu0 0.0
        %1536 = vmatpush1.msra.mxu0 0.0
        %1537 = vmatprep.subr.mxu0 0.0
        %1538 = vmatpush1.msra.mxu0 0.0
        %1539 = vmatprep.subr.mxu0 0.0
        %1540 = vmatpush1.msra.mxu0 0.0
        %1541 = vmatprep.subr.mxu0 0.0
        %1542 = vmatpush1.msra.mxu0 0.0
        %1543 = vmatprep.subr.mxu0 0.0
        %1544 = vmatpush1.msra.mxu0 0.0
        %1545 = vmatprep.subr.mxu0 0.0
        %1546 = vmatpush1.msra.mxu0 0.0
        %1547 = vmatprep.subr.mxu0 0.0
        %1548 = vmatpush1.msra.mxu0 0.0
        %1549 = vmatprep.subr.mxu0 0.0
        %1550 = vmatpush1.msra.mxu0 0.0
        %1551 = vmatprep.subr.mxu0 0.0
        %1552 = vmatpush1.msra.mxu0 0.0
        %1553 = vmatprep.subr.mxu0 0.0
        %1554 = vmatpush1.msra.mxu0 0.0
        %1555 = vmatprep.subr.mxu0 0.0
        %1556 = vmatpush1.msra.mxu0 0.0
        %1557 = vmatprep.subr.mxu0 0.0
        %1558 = vmatpush1.msra.mxu0 0.0
        %1559 = vmatprep.mubr.f32.mxu0 0.0
        %1560 = vmatmul.mubr.f32.gmra.mrb[0].mxu0 %v1478
        %v1561 = vpop.f32.mrb[0].mxu0
        %v1562 = vadd.f32 %v1450, %v1561
        %v1563 = vpop.f32.mrb[0].mxu0
        %v1564 = vadd.f32 %v1450, %v1563
        %1565 = vmatprep.mubr.f32.mxu0 0.0
        %1566 = vmatmul.mubr.f32.gmra.mrb[0].mxu0 %v1481
        %v1567 = vpop.f32.mrb[0].mxu0
        %v1568 = vadd.f32 %v1455, %v1567
        %v1569 = vpop.f32.mrb[0].mxu0
        %v1570 = vadd.f32 %v1455, %v1569
        %1571 = vmatprep.mubr.f32.mxu0 0.0
        %1572 = vmatmul.mubr.f32.gmra.mrb[0].mxu0 %v1484
        %v1573 = vpop.f32.mrb[0].mxu0
        %v1574 = vadd.f32 %v1460, %v1573
        %v1575 = vpop.f32.mrb[0].mxu0
        %v1576 = vadd.f32 %v1460, %v1575
        %1577 = vmatprep.mubr.f32.mxu0 0.0
        %1578 = vmatmul.mubr.f32.gmra.mrb[0].mxu0 %v1487
        %v1579 = vpop.f32.mrb[0].mxu0
        %v1580 = vadd.f32 %v1465, %v1579
        %v1581 = vpop.f32.mrb[0].mxu0
        %v1582 = vadd.f32 %v1465, %v1581
        %1583 = vmatprep.mubr.f32.mxu0 0.0
        %1584 = vmatmul.mubr.f32.gmra.mrb[0].mxu0 %v1490
        %v1585 = vpop.f32.mrb[0].mxu0
        %v1586 = vadd.f32 %v1470, %v1585
        %v1587 = vpop.f32.mrb[0].mxu0
        %v1588 = vadd.f32 %v1470, %v1587
        %1589 = vmatprep.mubr.f32.mxu0 0.0
        %1590 = vmatmul.mubr.f32.gmra.mrb[0].mxu0 %v1493
        %v1591 = vpop.f32.mrb[0].mxu0
        %v1592 = vadd.f32 %v1475, %v1591
        %v1593 = vpop.f32.mrb[0].mxu0
        %v1594 = vadd.f32 %v1475, %v1593
        %1595 = vdwg.mxu0
        %1596 = vxpose.xlu0.b32.start [1/16] %v1562, 128
        %1597 = vxpose.xlu0.b32.cont [2/16] %v1568, 128
        %1598 = vxpose.xlu0.b32.cont [3/16] %v1574, 128
        %1599 = vxpose.xlu0.b32.cont [4/16] %v1580, 128
        %1600 = vxpose.xlu0.b32.cont [5/16] %v1586, 128
        %1601 = vxpose.xlu0.b32.cont [6/16] %v1592, 128
        %1602 = vxpose.xlu0.b32.cont [7/16] 0.0, 128
        %1603 = vxpose.xlu0.b32.cont [8/16] 0.0, 128
        %1604 = vxpose.xlu0.b32.cont [9/16] 0.0, 128
        %1605 = vxpose.xlu0.b32.cont [10/16] 0.0, 128
        %1606 = vxpose.xlu0.b32.cont [11/16] 0.0, 128
        %1607 = vxpose.xlu0.b32.cont [12/16] 0.0, 128
        %1608 = vxpose.xlu0.b32.cont [13/16] 0.0, 128
        %1609 = vxpose.xlu0.b32.cont [14/16] 0.0, 128
        %1610 = vxpose.xlu0.b32.cont [15/16] 0.0, 128
        %1611 = vxpose.xlu0.b32.end [16/16] 0.0, 128
        %v1612 = vpop.trf.xlu0
        %v1613 = vpop.trf.xlu0
        %v1614 = vpop.trf.xlu0
        %v1615 = vpop.trf.xlu0
        %v1616 = vpop.trf.xlu0
        %v1617 = vpop.trf.xlu0
        %v1618 = vpop.trf.xlu0
        %v1619 = vpop.trf.xlu0
        %v1620 = vpop.trf.xlu0
        %v1621 = vpop.trf.xlu0
        %v1622 = vpop.trf.xlu0
        %v1623 = vpop.trf.xlu0
        %v1624 = vpop.trf.xlu0
        %v1625 = vpop.trf.xlu0
        %v1626 = vpop.trf.xlu0
        %v1627 = vpop.trf.xlu0
        %1628 = vxpose.xlu0.b32.start [1/16] %v1564, 128
        %1629 = vxpose.xlu0.b32.cont [2/16] %v1570, 128
        %1630 = vxpose.xlu0.b32.cont [3/16] %v1576, 128
        %1631 = vxpose.xlu0.b32.cont [4/16] %v1582, 128
        %1632 = vxpose.xlu0.b32.cont [5/16] %v1588, 128
        %1633 = vxpose.xlu0.b32.cont [6/16] %v1594, 128
        %1634 = vxpose.xlu0.b32.cont [7/16] 0.0, 128
        %1635 = vxpose.xlu0.b32.cont [8/16] 0.0, 128
        %1636 = vxpose.xlu0.b32.cont [9/16] 0.0, 128
        %1637 = vxpose.xlu0.b32.cont [10/16] 0.0, 128
        %1638 = vxpose.xlu0.b32.cont [11/16] 0.0, 128
        %1639 = vxpose.xlu0.b32.cont [12/16] 0.0, 128
        %1640 = vxpose.xlu0.b32.cont [13/16] 0.0, 128
        %1641 = vxpose.xlu0.b32.cont [14/16] 0.0, 128
        %1642 = vxpose.xlu0.b32.cont [15/16] 0.0, 128
        %1643 = vxpose.xlu0.b32.end [16/16] 0.0, 128
        %v1644 = vpop.trf.xlu0
        %v1645 = vpop.trf.xlu0
        %v1646 = vpop.trf.xlu0
        %v1647 = vpop.trf.xlu0
        %v1648 = vpop.trf.xlu0
        %v1649 = vpop.trf.xlu0
        %v1650 = vpop.trf.xlu0
        %v1651 = vpop.trf.xlu0
        %v1652 = vpop.trf.xlu0
        %v1653 = vpop.trf.xlu0
        %v1654 = vpop.trf.xlu0
        %v1655 = vpop.trf.xlu0
        %v1656 = vpop.trf.xlu0
        %v1657 = vpop.trf.xlu0
        %v1658 = vpop.trf.xlu0
        %v1659 = vpop.trf.xlu0
        %1660 = vst.msk [vmem:[%s334] sm:$0xff] %vm842, %v1612
        %1661 = vst.msk [vmem:[%s334 + $0x8] sm:$0xff] %vm842, %v1613
        %1662 = vst.msk [vmem:[%s334 + $0x10] sm:$0xff] %vm842, %v1614
        %1663 = vst.msk [vmem:[%s334 + $0x18] sm:$0xff] %vm842, %v1615
        %1664 = vst.msk [vmem:[%s334 + $0x20] sm:$0xff] %vm842, %v1616
        %1665 = vst.msk [vmem:[%s334 + $0x28] sm:$0xff] %vm842, %v1617
        %1666 = vst.msk [vmem:[%s334 + $0x30] sm:$0xff] %vm842, %v1618
        %1667 = vst.msk [vmem:[%s334 + $0x38] sm:$0xff] %vm842, %v1619
        %1668 = vst.msk [vmem:[%s334 + $0x40] sm:$0xff] %vm842, %v1620
        %1669 = vst.msk [vmem:[%s334 + $0x48] sm:$0xff] %vm842, %v1621
        %1670 = vst.msk [vmem:[%s334 + $0x50] sm:$0xff] %vm842, %v1622
        %1671 = vst.msk [vmem:[%s334 + $0x58] sm:$0xff] %vm842, %v1623
        %1672 = vst.msk [vmem:[%s334 + $0x60] sm:$0xff] %vm842, %v1624
        %1673 = vst.msk [vmem:[%s334 + $0x68] sm:$0xff] %vm842, %v1625
        %1674 = vst.msk [vmem:[%s334 + $0x70] sm:$0xff] %vm842, %v1626
        %1675 = vst.msk [vmem:[%s334 + $0x78] sm:$0xff] %vm842, %v1627
        %1676 = vst.msk [vmem:[%s334 + $0x80] sm:$0xff] %vm842, %v1644
        %1677 = vst.msk [vmem:[%s334 + $0x88] sm:$0xff] %vm842, %v1645
        %1678 = vst.msk [vmem:[%s334 + $0x90] sm:$0xff] %vm842, %v1646
        %1679 = vst.msk [vmem:[%s334 + $0x98] sm:$0xff] %vm842, %v1647
        %1680 = vst.msk [vmem:[%s334 + $0xa0] sm:$0xff] %vm842, %v1648
        %1681 = vst.msk [vmem:[%s334 + $0xa8] sm:$0xff] %vm842, %v1649
        %1682 = vst.msk [vmem:[%s334 + $0xb0] sm:$0xff] %vm842, %v1650
        %1683 = vst.msk [vmem:[%s334 + $0xb8] sm:$0xff] %vm842, %v1651
        %1684 = vst.msk [vmem:[%s334 + $0xc0] sm:$0xff] %vm842, %v1652
        %1685 = vst.msk [vmem:[%s334 + $0xc8] sm:$0xff] %vm842, %v1653
        %1686 = vst.msk [vmem:[%s334 + $0xd0] sm:$0xff] %vm842, %v1654
        %1687 = vst.msk [vmem:[%s334 + $0xd8] sm:$0xff] %vm842, %v1655
        %1688 = vst.msk [vmem:[%s334 + $0xe0] sm:$0xff] %vm842, %v1656
        %1689 = vst.msk [vmem:[%s334 + $0xe8] sm:$0xff] %vm842, %v1657
        %1690 = vst.msk [vmem:[%s334 + $0xf0] sm:$0xff] %vm842, %v1658
        %1691 = vst.msk [vmem:[%s334 + $0xf8] sm:$0xff] %vm842, %v1659
        %s1692 = sand.u32 %s222, 1
        %s1693 = sand.u32 %s222, 1
        %s1694 = smul.addr %s1693, 256
        %s1695 = scalar_lea.vmem [#allocation2], %s1694
        // Predicated region
        $region57: #{tpu_custom_call.1} parent=55 // pred_check
          %p1696 = pneg %p232
        $region58: #{tpu_custom_call.1} parent=55 // pred_check_branch
          %1698 = sbr.rel (%p1696) target = $region60
        $region59: #{tpu_custom_call.1} parent=55 // pred_region
          %s1699 = smul.u32 32, %s20
          %s1700 = ssub.s32 38, %s1699
          %p1701 = scmp.lt.s32.totalorder %s1700, 32
          %s1702 = scalar_select %p1701, %s1700, 32
          %s1703 = smul.u32 128, %s1702
          %p1704 = scmp.ne.s32.totalorder 0, %s1703
          %s1705 = smul.addr %s1699, 8
          %s1706 = scalar_lea.vmem %s9, %s1705
          // Predicated region
          $region61: #{tpu_custom_call.1} parent=59 // pred_check
            %p1707 = pneg %p1704
          $region62: #{tpu_custom_call.1} parent=59 // pred_check_branch
            %1709 = sbr.rel (%p1707) target = $region64
          $region63: #{tpu_custom_call.1} parent=59 // pred_region
            // Predicated region
            $region65: #{tpu_custom_call.1} parent=63 // pred_check
              _
            $region66: #{tpu_custom_call.1} parent=63 // pred_check_branch
              %1711 = sbr.rel (0) target = $region68
            $region67: #{tpu_custom_call.1} parent=63 // pred_region
              // Predicated region
              $region87: #{tpu_custom_call.1} parent=67 // pred_check
                _
              $region88: #{tpu_custom_call.1} parent=67 // pred_check_branch
                %1822 = sbr.rel (0) target = $region90
              $region89: #{tpu_custom_call.1} parent=67 // pred_region
                %s1823 = sshrl.u32 %s1702, 5
                // While loop
                $region91: #{tpu_custom_call.1} parent=89 // loop_pre_header
                  _
                $region92: #{tpu_custom_call.1} parent=89 // loop_header
                  %s1825 = sphi 0, %s1827
                  %p1826 = scmp.ge.s32.totalorder %s1825, %s1823
                  %s1830 = sphi 0, %s1899
                  %s1831 = sphi %s1695, %s1902
                  %s1832 = sphi %s1706, %s1903
                $region93: #{tpu_custom_call.1} parent=89 // loop_header_branch
                  %1829 = sbr.rel (%p1826) target = $region97
                $region94: #{tpu_custom_call.1} parent=89 // loop_body
                  %v1833 = vld [vmem:[%s1831] sm:$0xff]
                  %1834 = vst [vmem:[%s1832] sm:$0xff] %v1833
                  %v1835 = vld [vmem:[%s1831 + $0x8] sm:$0xff]
                  %1836 = vst [vmem:[%s1832 + $0x8] sm:$0xff] %v1835
                  %v1837 = vld [vmem:[%s1831 + $0x10] sm:$0xff]
                  %1838 = vst [vmem:[%s1832 + $0x10] sm:$0xff] %v1837
                  %v1839 = vld [vmem:[%s1831 + $0x18] sm:$0xff]
                  %1840 = vst [vmem:[%s1832 + $0x18] sm:$0xff] %v1839
                  %v1841 = vld [vmem:[%s1831 + $0x20] sm:$0xff]
                  %1842 = vst [vmem:[%s1832 + $0x20] sm:$0xff] %v1841
                  %v1843 = vld [vmem:[%s1831 + $0x28] sm:$0xff]
                  %1844 = vst [vmem:[%s1832 + $0x28] sm:$0xff] %v1843
                  %v1845 = vld [vmem:[%s1831 + $0x30] sm:$0xff]
                  %1846 = vst [vmem:[%s1832 + $0x30] sm:$0xff] %v1845
                  %v1847 = vld [vmem:[%s1831 + $0x38] sm:$0xff]
                  %1848 = vst [vmem:[%s1832 + $0x38] sm:$0xff] %v1847
                  %v1849 = vld [vmem:[%s1831 + $0x40] sm:$0xff]
                  %1850 = vst [vmem:[%s1832 + $0x40] sm:$0xff] %v1849
                  %v1851 = vld [vmem:[%s1831 + $0x48] sm:$0xff]
                  %1852 = vst [vmem:[%s1832 + $0x48] sm:$0xff] %v1851
                  %v1853 = vld [vmem:[%s1831 + $0x50] sm:$0xff]
                  %1854 = vst [vmem:[%s1832 + $0x50] sm:$0xff] %v1853
                  %v1855 = vld [vmem:[%s1831 + $0x58] sm:$0xff]
                  %1856 = vst [vmem:[%s1832 + $0x58] sm:$0xff] %v1855
                  %v1857 = vld [vmem:[%s1831 + $0x60] sm:$0xff]
                  %1858 = vst [vmem:[%s1832 + $0x60] sm:$0xff] %v1857
                  %v1859 = vld [vmem:[%s1831 + $0x68] sm:$0xff]
                  %1860 = vst [vmem:[%s1832 + $0x68] sm:$0xff] %v1859
                  %v1861 = vld [vmem:[%s1831 + $0x70] sm:$0xff]
                  %1862 = vst [vmem:[%s1832 + $0x70] sm:$0xff] %v1861
                  %v1863 = vld [vmem:[%s1831 + $0x78] sm:$0xff]
                  %1864 = vst [vmem:[%s1832 + $0x78] sm:$0xff] %v1863
                  %v1865 = vld [vmem:[%s1831 + $0x80] sm:$0xff]
                  %1866 = vst [vmem:[%s1832 + $0x80] sm:$0xff] %v1865
                  %v1867 = vld [vmem:[%s1831 + $0x88] sm:$0xff]
                  %1868 = vst [vmem:[%s1832 + $0x88] sm:$0xff] %v1867
                  %v1869 = vld [vmem:[%s1831 + $0x90] sm:$0xff]
                  %1870 = vst [vmem:[%s1832 + $0x90] sm:$0xff] %v1869
                  %v1871 = vld [vmem:[%s1831 + $0x98] sm:$0xff]
                  %1872 = vst [vmem:[%s1832 + $0x98] sm:$0xff] %v1871
                  %v1873 = vld [vmem:[%s1831 + $0xa0] sm:$0xff]
                  %1874 = vst [vmem:[%s1832 + $0xa0] sm:$0xff] %v1873
                  %v1875 = vld [vmem:[%s1831 + $0xa8] sm:$0xff]
                  %1876 = vst [vmem:[%s1832 + $0xa8] sm:$0xff] %v1875
                  %v1877 = vld [vmem:[%s1831 + $0xb0] sm:$0xff]
                  %1878 = vst [vmem:[%s1832 + $0xb0] sm:$0xff] %v1877
                  %v1879 = vld [vmem:[%s1831 + $0xb8] sm:$0xff]
                  %1880 = vst [vmem:[%s1832 + $0xb8] sm:$0xff] %v1879
                  %v1881 = vld [vmem:[%s1831 + $0xc0] sm:$0xff]
                  %1882 = vst [vmem:[%s1832 + $0xc0] sm:$0xff] %v1881
                  %v1883 = vld [vmem:[%s1831 + $0xc8] sm:$0xff]
                  %1884 = vst [vmem:[%s1832 + $0xc8] sm:$0xff] %v1883
                  %v1885 = vld [vmem:[%s1831 + $0xd0] sm:$0xff]
                  %1886 = vst [vmem:[%s1832 + $0xd0] sm:$0xff] %v1885
                  %v1887 = vld [vmem:[%s1831 + $0xd8] sm:$0xff]
                  %1888 = vst [vmem:[%s1832 + $0xd8] sm:$0xff] %v1887
                  %v1889 = vld [vmem:[%s1831 + $0xe0] sm:$0xff]
                  %1890 = vst [vmem:[%s1832 + $0xe0] sm:$0xff] %v1889
                  %v1891 = vld [vmem:[%s1831 + $0xe8] sm:$0xff]
                  %1892 = vst [vmem:[%s1832 + $0xe8] sm:$0xff] %v1891
                  %v1893 = vld [vmem:[%s1831 + $0xf0] sm:$0xff]
                  %1894 = vst [vmem:[%s1832 + $0xf0] sm:$0xff] %v1893
                  %v1895 = vld [vmem:[%s1831 + $0xf8] sm:$0xff]
                  %1896 = vst [vmem:[%s1832 + $0xf8] sm:$0xff] %v1895
                  %s1897 = sadd.s32 1, %s1830
                  %p1898 = scmp.ge.s32.totalorder %s1897, %s1823
                  %s1899 = scalar_select %p1898, 0, %s1897
                  %s1900 = smul.u32 %s1899, 256
                  %s1901 = smul.u32 %s1899, 256
                  %s1902 = scalar_lea.vmem %s1695, %s1900 [#allocation2]
                  %s1903 = scalar_lea.vmem %s1706, %s1901
                $region95: #{tpu_custom_call.1} parent=89 // loop_footer
                  %s1827 = sadd.s32 %s1825, 1
                $region96: #{tpu_custom_call.1} parent=89 // loop_footer_branch
                  %1824 = sbr.rel target = $region92
                $region97: #{tpu_custom_call.1} parent=89 // loop_exit
                  _
                %s1904 = sshrl.u32 %s1702, 5
                %s1905 = sand.u32 %s1702, 31
                %s1906 = smul.u32 %s1904, 32
                %s1907 = smul.u32 8, %s1906
                %s1908 = scalar_lea.vmem %s1695, %s1907 [#allocation2]
                %s1909 = smul.u32 8, %s1906
                %s1910 = scalar_lea.vmem %s1706, %s1909
                // While loop
                $region98: #{tpu_custom_call.1} parent=89 // loop_pre_header
                  _
                $region99: #{tpu_custom_call.1} parent=89 // loop_header
                  %s1912 = sphi 0, %s1914
                  %p1913 = scmp.ge.s32.totalorder %s1912, %s1905
                  %s1917 = sphi 0, %s1924
                  %s1918 = sphi %s1908, %s1927
                  %s1919 = sphi %s1910, %s1928
                $region100: #{tpu_custom_call.1} parent=89 // loop_header_branch
                  %1916 = sbr.rel (%p1913) target = $region104
                $region101: #{tpu_custom_call.1} parent=89 // loop_body
                  %v1920 = vld [vmem:[%s1918] sm:$0xff]
                  %1921 = vst [vmem:[%s1919] sm:$0xff] %v1920
                  %s1922 = sadd.s32 1, %s1917
                  %p1923 = scmp.ge.s32.totalorder %s1922, %s1905
                  %s1924 = scalar_select %p1923, 0, %s1922
                  %s1925 = smul.u32 %s1924, 8
                  %s1926 = smul.u32 %s1924, 8
                  %s1927 = scalar_lea.vmem %s1908, %s1925 [#allocation2]
                  %s1928 = scalar_lea.vmem %s1910, %s1926
                $region102: #{tpu_custom_call.1} parent=89 // loop_footer
                  %s1914 = sadd.s32 %s1912, 1
                $region103: #{tpu_custom_call.1} parent=89 // loop_footer_branch
                  %1911 = sbr.rel target = $region99
                $region104: #{tpu_custom_call.1} parent=89 // loop_exit
                  _
              $region90: #{tpu_custom_call.1} parent=67 // pred_fallthru
                _
              // Predicated region
              $region105: #{tpu_custom_call.1} parent=67 // pred_check
                _
              $region106: #{tpu_custom_call.1} parent=67 // pred_check_branch
                %1930 = sbr.rel target = $region108
              $region107: #{tpu_custom_call.1} parent=67 // pred_region
                _
              $region108: #{tpu_custom_call.1} parent=67 // pred_fallthru
                _
            $region68: #{tpu_custom_call.1} parent=63 // pred_fallthru
              _
            // Predicated region
            $region69: #{tpu_custom_call.1} parent=63 // pred_check
              _
            $region70: #{tpu_custom_call.1} parent=63 // pred_check_branch
              %1713 = sbr.rel target = $region72
            $region71: #{tpu_custom_call.1} parent=63 // pred_region
              %s1715 = sshrl.u32 %s1702, 5
              // While loop
              $region73: #{tpu_custom_call.1} parent=71 // loop_pre_header
                _
              $region74: #{tpu_custom_call.1} parent=71 // loop_header
                %s1717 = sphi 0, %s1719
                %p1718 = scmp.ge.s32.totalorder %s1717, %s1715
                %s1722 = sphi 0, %s1791
                %s1723 = sphi %s1695, %s1794
                %s1724 = sphi %s1706, %s1795
              $region75: #{tpu_custom_call.1} parent=71 // loop_header_branch
                %1721 = sbr.rel (%p1718) target = $region79
              $region76: #{tpu_custom_call.1} parent=71 // loop_body
                %v1725 = vld [vmem:[%s1723] sm:$0xff]
                %1726 = vst [vmem:[%s1724] sm:$0xff] %v1725
                %v1727 = vld [vmem:[%s1723 + $0x8] sm:$0xff]
                %1728 = vst [vmem:[%s1724 + $0x8] sm:$0xff] %v1727
                %v1729 = vld [vmem:[%s1723 + $0x10] sm:$0xff]
                %1730 = vst [vmem:[%s1724 + $0x10] sm:$0xff] %v1729
                %v1731 = vld [vmem:[%s1723 + $0x18] sm:$0xff]
                %1732 = vst [vmem:[%s1724 + $0x18] sm:$0xff] %v1731
                %v1733 = vld [vmem:[%s1723 + $0x20] sm:$0xff]
                %1734 = vst [vmem:[%s1724 + $0x20] sm:$0xff] %v1733
                %v1735 = vld [vmem:[%s1723 + $0x28] sm:$0xff]
                %1736 = vst [vmem:[%s1724 + $0x28] sm:$0xff] %v1735
                %v1737 = vld [vmem:[%s1723 + $0x30] sm:$0xff]
                %1738 = vst [vmem:[%s1724 + $0x30] sm:$0xff] %v1737
                %v1739 = vld [vmem:[%s1723 + $0x38] sm:$0xff]
                %1740 = vst [vmem:[%s1724 + $0x38] sm:$0xff] %v1739
                %v1741 = vld [vmem:[%s1723 + $0x40] sm:$0xff]
                %1742 = vst [vmem:[%s1724 + $0x40] sm:$0xff] %v1741
                %v1743 = vld [vmem:[%s1723 + $0x48] sm:$0xff]
                %1744 = vst [vmem:[%s1724 + $0x48] sm:$0xff] %v1743
                %v1745 = vld [vmem:[%s1723 + $0x50] sm:$0xff]
                %1746 = vst [vmem:[%s1724 + $0x50] sm:$0xff] %v1745
                %v1747 = vld [vmem:[%s1723 + $0x58] sm:$0xff]
                %1748 = vst [vmem:[%s1724 + $0x58] sm:$0xff] %v1747
                %v1749 = vld [vmem:[%s1723 + $0x60] sm:$0xff]
                %1750 = vst [vmem:[%s1724 + $0x60] sm:$0xff] %v1749
                %v1751 = vld [vmem:[%s1723 + $0x68] sm:$0xff]
                %1752 = vst [vmem:[%s1724 + $0x68] sm:$0xff] %v1751
                %v1753 = vld [vmem:[%s1723 + $0x70] sm:$0xff]
                %1754 = vst [vmem:[%s1724 + $0x70] sm:$0xff] %v1753
                %v1755 = vld [vmem:[%s1723 + $0x78] sm:$0xff]
                %1756 = vst [vmem:[%s1724 + $0x78] sm:$0xff] %v1755
                %v1757 = vld [vmem:[%s1723 + $0x80] sm:$0xff]
                %1758 = vst [vmem:[%s1724 + $0x80] sm:$0xff] %v1757
                %v1759 = vld [vmem:[%s1723 + $0x88] sm:$0xff]
                %1760 = vst [vmem:[%s1724 + $0x88] sm:$0xff] %v1759
                %v1761 = vld [vmem:[%s1723 + $0x90] sm:$0xff]
                %1762 = vst [vmem:[%s1724 + $0x90] sm:$0xff] %v1761
                %v1763 = vld [vmem:[%s1723 + $0x98] sm:$0xff]
                %1764 = vst [vmem:[%s1724 + $0x98] sm:$0xff] %v1763
                %v1765 = vld [vmem:[%s1723 + $0xa0] sm:$0xff]
                %1766 = vst [vmem:[%s1724 + $0xa0] sm:$0xff] %v1765
                %v1767 = vld [vmem:[%s1723 + $0xa8] sm:$0xff]
                %1768 = vst [vmem:[%s1724 + $0xa8] sm:$0xff] %v1767
                %v1769 = vld [vmem:[%s1723 + $0xb0] sm:$0xff]
                %1770 = vst [vmem:[%s1724 + $0xb0] sm:$0xff] %v1769
                %v1771 = vld [vmem:[%s1723 + $0xb8] sm:$0xff]
                %1772 = vst [vmem:[%s1724 + $0xb8] sm:$0xff] %v1771
                %v1773 = vld [vmem:[%s1723 + $0xc0] sm:$0xff]
                %1774 = vst [vmem:[%s1724 + $0xc0] sm:$0xff] %v1773
                %v1775 = vld [vmem:[%s1723 + $0xc8] sm:$0xff]
                %1776 = vst [vmem:[%s1724 + $0xc8] sm:$0xff] %v1775
                %v1777 = vld [vmem:[%s1723 + $0xd0] sm:$0xff]
                %1778 = vst [vmem:[%s1724 + $0xd0] sm:$0xff] %v1777
                %v1779 = vld [vmem:[%s1723 + $0xd8] sm:$0xff]
                %1780 = vst [vmem:[%s1724 + $0xd8] sm:$0xff] %v1779
                %v1781 = vld [vmem:[%s1723 + $0xe0] sm:$0xff]
                %1782 = vst [vmem:[%s1724 + $0xe0] sm:$0xff] %v1781
                %v1783 = vld [vmem:[%s1723 + $0xe8] sm:$0xff]
                %1784 = vst [vmem:[%s1724 + $0xe8] sm:$0xff] %v1783
                %v1785 = vld [vmem:[%s1723 + $0xf0] sm:$0xff]
                %1786 = vst [vmem:[%s1724 + $0xf0] sm:$0xff] %v1785
                %v1787 = vld [vmem:[%s1723 + $0xf8] sm:$0xff]
                %1788 = vst [vmem:[%s1724 + $0xf8] sm:$0xff] %v1787
                %s1789 = sadd.s32 1, %s1722
                %p1790 = scmp.ge.s32.totalorder %s1789, %s1715
                %s1791 = scalar_select %p1790, 0, %s1789
                %s1792 = smul.u32 %s1791, 256
                %s1793 = smul.u32 %s1791, 256
                %s1794 = scalar_lea.vmem %s1695, %s1792 [#allocation2]
                %s1795 = scalar_lea.vmem %s1706, %s1793
              $region77: #{tpu_custom_call.1} parent=71 // loop_footer
                %s1719 = sadd.s32 %s1717, 1
              $region78: #{tpu_custom_call.1} parent=71 // loop_footer_branch
                %1716 = sbr.rel target = $region74
              $region79: #{tpu_custom_call.1} parent=71 // loop_exit
                _
              %s1796 = sshrl.u32 %s1702, 5
              %s1797 = sand.u32 %s1702, 31
              %s1798 = smul.u32 %s1796, 32
              %s1799 = smul.u32 8, %s1798
              %s1800 = scalar_lea.vmem %s1695, %s1799 [#allocation2]
              %s1801 = smul.u32 8, %s1798
              %s1802 = scalar_lea.vmem %s1706, %s1801
              // While loop
              $region80: #{tpu_custom_call.1} parent=71 // loop_pre_header
                _
              $region81: #{tpu_custom_call.1} parent=71 // loop_header
                %s1804 = sphi 0, %s1806
                %p1805 = scmp.ge.s32.totalorder %s1804, %s1797
                %s1809 = sphi 0, %s1816
                %s1810 = sphi %s1800, %s1819
                %s1811 = sphi %s1802, %s1820
              $region82: #{tpu_custom_call.1} parent=71 // loop_header_branch
                %1808 = sbr.rel (%p1805) target = $region86
              $region83: #{tpu_custom_call.1} parent=71 // loop_body
                %v1812 = vld [vmem:[%s1810] sm:$0xff]
                %1813 = vst [vmem:[%s1811] sm:$0xff] %v1812
                %s1814 = sadd.s32 1, %s1809
                %p1815 = scmp.ge.s32.totalorder %s1814, %s1797
                %s1816 = scalar_select %p1815, 0, %s1814
                %s1817 = smul.u32 %s1816, 8
                %s1818 = smul.u32 %s1816, 8
                %s1819 = scalar_lea.vmem %s1800, %s1817 [#allocation2]
                %s1820 = scalar_lea.vmem %s1802, %s1818
              $region84: #{tpu_custom_call.1} parent=71 // loop_footer
                %s1806 = sadd.s32 %s1804, 1
              $region85: #{tpu_custom_call.1} parent=71 // loop_footer_branch
                %1803 = sbr.rel target = $region81
              $region86: #{tpu_custom_call.1} parent=71 // loop_exit
                _
            $region72: #{tpu_custom_call.1} parent=63 // pred_fallthru
              _
          $region64: #{tpu_custom_call.1} parent=59 // pred_fallthru
            _
          %1931 = vnop
        $region60: #{tpu_custom_call.1} parent=55 // pred_fallthru
          _
      $region56: #{tpu_custom_call.1} parent=5 // pred_fallthru
        _
      %p1932 = scmp.le.s32.totalorder 2, %s15
      // Predicated region
      $region109: #{tpu_custom_call.1} parent=5 // pred_check
        %p1933 = pneg %p1932
      $region110: #{tpu_custom_call.1} parent=5 // pred_check_branch
        %1935 = sbr.rel (%p1933) target = $region112
      $region111: #{tpu_custom_call.1} parent=5 // pred_region
        %s1936 = ssub.s32 %s15, 2
        // Predicated region
        $region113: #{tpu_custom_call.1} parent=111 // pred_check
          %p1937 = pneg %p238
        $region114: #{tpu_custom_call.1} parent=111 // pred_check_branch
          %1939 = sbr.rel (%p1937) target = $region116
        $region115: #{tpu_custom_call.1} parent=111 // pred_region
          %s1940 = sand.u32 %s223, 1
          %s1941 = sand.u32 %s223, 1
          %s1942 = smul.addr %s1941, 256
          %s1943 = scalar_lea.vmem [#allocation2], %s1942
        $region116: #{tpu_custom_call.1} parent=111 // pred_fallthru
          _
      $region112: #{tpu_custom_call.1} parent=5 // pred_fallthru
        _
    $region6: #{tpu_custom_call.1} parent=1 // loop_footer
      %s19 = sadd.s32 1, %s15
    $region7: #{tpu_custom_call.1} parent=1 // loop_footer_branch
      %14 = sbr.rel target = $region3
    $region8: #{tpu_custom_call.1} parent=1 // loop_exit
      _

</llo_original>
